<compile_context>
chip_gen: v7x
topology: tpu7x:2x2x1
jax: 0.10.0
libtpu: 0.0.40
codegen_flags: <defaults>
</compile_context>

<pallas_src>
import numpy as np
import jax
import jax.numpy as jnp
from jax import lax
from jax.experimental import pallas as pl
from jax.experimental.pallas import tpu as pltpu

WINDOW_SIZE = 11
HALO = WINDOW_SIZE - 1          # 10 rows of valid-conv halo
HALO_BLK = 16                   # sublane-aligned halo block height


# ---------------------------------------------------------------------------
# Deterministic window construction (matches torch gaussian()/create_window()).
# ---------------------------------------------------------------------------
def _gaussian_1d(window_size=WINDOW_SIZE, sigma=1.5):
    x = np.arange(window_size, dtype=np.float64)
    g = np.exp(-((x - window_size // 2) ** 2) / (2.0 * sigma ** 2))
    return g / g.sum()          # the 2D torch window is outer(g, g) -> separable


# ---------------------------------------------------------------------------
# Pallas kernel factory: separable conv + SSIM map + per-stripe partial sum.
# ---------------------------------------------------------------------------
def _make_ssim_kernel(tile_oh, W, OH, OW, g1d):
    g = tuple(float(v) for v in g1d)   # baked-in constants, no SMEM reads

    def kernel(c_ref, m1_ref, h1_ref, m2_ref, h2_ref, out_ref, s1_ref, s2_ref):
        # c_ref : SMEM (2,)            -> [C1, C2]
        # m*_ref: VMEM (tile_oh, W)    -> main row stripe of img1/img2
        # h*_ref: VMEM (HALO_BLK, W)   -> next 16 rows (halo source)
        # out   : VMEM (1, 8, 128)     -> lane-dense per-stripe partial sum
        # s*_ref: VMEM (tile_oh+HALO,W)-> assembled halo'd stripe (scratch)
        i = pl.program_id(0)

        # Assemble the halo'd input stripes (static, sublane-aligned stores).
        s1_ref[0:tile_oh, :] = m1_ref[...]
        s1_ref[tile_oh:tile_oh + HALO, :] = h1_ref[0:HALO, :]
        s2_ref[0:tile_oh, :] = m2_ref[...]
        s2_ref[tile_oh:tile_oh + HALO, :] = h2_ref[0:HALO, :]

        img1 = s1_ref[...]
        img2 = s2_ref[...]
        img11 = img1 * img1
        img22 = img2 * img2
        img12 = img1 * img2

        # Vertical separable pass (sublane-direction slices, 11 taps/slab).
        def vpass(x):
            acc = g[0] * x[0:tile_oh, :]
            for dy in range(1, WINDOW_SIZE):
                acc = acc + g[dy] * x[dy:dy + tile_oh, :]
            return acc

        v1, v2 = vpass(img1), vpass(img2)
        v11, v22, v12 = vpass(img11), vpass(img22), vpass(img12)

        # Horizontal separable pass (lane-direction slices, 11 taps/slab).
        def hpass(x):
            acc = g[0] * x[:, 0:OW]
            for dx in range(1, WINDOW_SIZE):
                acc = acc + g[dx] * x[:, dx:dx + OW]
            return acc

        mu1, mu2 = hpass(v1), hpass(v2)
        e11, e22, e12 = hpass(v11), hpass(v22), hpass(v12)

        c1 = c_ref[0]
        c2 = c_ref[1]

        mu1_sq = mu1 * mu1
        mu2_sq = mu2 * mu2
        mu1_mu2 = mu1 * mu2
        sigma1_sq = e11 - mu1_sq
        sigma2_sq = e22 - mu2_sq
        sigma12 = e12 - mu1_mu2

        v1n = 2.0 * sigma12 + c2
        v2n = sigma1_sq + sigma2_sq + c2
        numer = (2.0 * mu1_mu2 + c1) * v1n
        denom = (mu1_sq + mu2_sq + c1) * v2n
        ssim_map = numer * pl.reciprocal(denom, approx=False)   # EUP, not VALU

        # Mask output rows past the true output height (only the last,
        # zero-padded stripe has any); the mean uses the *global* OH*OW.
        row = lax.broadcasted_iota(jnp.int32, (tile_oh, OW), 0) + i * tile_oh
        part = jnp.sum(jnp.where(row < OH, ssim_map, 0.0))

        # Lane-dense partial-sum tile; wrapper reads [:, 0, 0].
        out_ref[...] = jnp.full((1, 8, 128), part, jnp.float32)

    return kernel


# ---------------------------------------------------------------------------
# Stripe-size selection: keep live VMEM per grid step well under scoped VMEM
# (sized so it is also safe for v7x's smaller 64 MiB per-core VMEM).
# ---------------------------------------------------------------------------
def _pick_tile_oh(OH, W):
    budget_bytes = 16 * 1024 * 1024            # live f32 slabs inside one step
    per_row_bytes = 24 * max(W, 128) * 4       # ~24 stripe-height slabs live
    t = budget_bytes // per_row_bytes
    t = max(HALO_BLK, min(512, int(t)))
    t = (t // HALO_BLK) * HALO_BLK             # halo block index must divide
    t = min(t, ((OH + HALO_BLK - 1) // HALO_BLK) * HALO_BLK)
    return max(HALO_BLK, t)


# ---------------------------------------------------------------------------
# Wrapper: L/C1/C2 (data dependent), padding, grid/BlockSpecs, final mean.
# ---------------------------------------------------------------------------
def ssim_pallas(img1, img2, val_range=None, tile_oh=None):
    img1 = img1.astype(jnp.float32)
    img2 = img2.astype(jnp.float32)
    H, W = img1.shape
    OH = H - WINDOW_SIZE + 1
    OW = W - WINDOW_SIZE + 1
    assert OH > 0 and OW > 0, "image must be larger than the 11x11 window"

    # Dynamic range L, exactly as in the reference ssim() (data dependent).
    if val_range is None:
        max_val = jnp.where(jnp.max(img1) > 128.0, 255.0, 1.0)
        min_val = jnp.where(jnp.min(img1) < -0.5, -1.0, 0.0)
        L = max_val - min_val
    else:
        L = jnp.float32(val_range)
    C1 = (0.01 * L) ** 2
    C2 = (0.03 * L) ** 2
    c = jnp.stack([C1, C2]).astype(jnp.float32)          # (2,) -> SMEM

    if tile_oh is None:
        tile_oh = _pick_tile_oh(OH, W)
    num_stripes = -(-OH // tile_oh)                      # cdiv

    # Pad rows so each main stripe and its 16-row halo block stay in bounds.
    # Padded rows only feed masked-out output rows.
    H_pad = num_stripes * tile_oh + HALO_BLK
    img1_p = jnp.pad(img1, ((0, H_pad - H), (0, 0)))
    img2_p = jnp.pad(img2, ((0, H_pad - H), (0, 0)))

    hb = tile_oh // HALO_BLK
    main_spec = pl.BlockSpec((tile_oh, W), lambda i: (i, 0))
    halo_spec = pl.BlockSpec((HALO_BLK, W), lambda i: ((i + 1) * hb, 0))

    kernel = _make_ssim_kernel(tile_oh, W, OH, OW, _gaussian_1d())

    partials = pl.pallas_call(
        kernel,
        out_shape=jax.ShapeDtypeStruct((num_stripes, 8, 128), jnp.float32),
        grid=(num_stripes,),
        in_specs=[
            pl.BlockSpec(memory_space=pltpu.MemorySpace.SMEM),   # [C1, C2]
            main_spec,                                           # img1 stripe
            halo_spec,                                           # img1 halo
            main_spec,                                           # img2 stripe
            halo_spec,                                           # img2 halo
        ],
        out_specs=pl.BlockSpec((1, 8, 128), lambda i: (i, 0, 0)),
        scratch_shapes=[
            pltpu.VMEM((tile_oh + HALO, W), jnp.float32),
            pltpu.VMEM((tile_oh + HALO, W), jnp.float32),
        ],
        compiler_params=pltpu.CompilerParams(
            dimension_semantics=("parallel",),
            vmem_limit_bytes=48 * 1024 * 1024,
        ),
    )(c, img1_p, img1_p, img2_p, img2_p)

    return jnp.sum(partials[:, 0, 0]) / float(OH * OW)


# ---------------------------------------------------------------------------
# Pure NumPy reference (mirrors the PyTorch ssim() math) for a sanity check.
# ---------------------------------------------------------------------------
def _ssim_ref_np(img1, img2):
    img1 = np.asarray(img1, np.float64)
    img2 = np.asarray(img2, np.float64)
    g = _gaussian_1d()
    win = np.outer(g, g)
    H, W = img1.shape
    K = win.shape[0]
    OH, OW = H - K + 1, W - K + 1

    max_val = 255.0 if img1.max() > 128 else 1.0
    min_val = -1.0 if img1.min() < -0.5 else 0.0
    L = max_val - min_val
    C1 = (0.01 * L) ** 2
    C2 = (0.03 * L) ** 2

    def conv(x):
        out = np.zeros((OH, OW))
        for i in range(OH):
            for j in range(OW):
                out[i, j] = np.sum(x[i:i + K, j:j + K] * win)
        return out

    mu1, mu2 = conv(img1), conv(img2)
    mu1_sq, mu2_sq, mu1_mu2 = mu1 ** 2, mu2 ** 2, mu1 * mu2
    sigma1_sq = conv(img1 * img1) - mu1_sq
    sigma2_sq = conv(img2 * img2) - mu2_sq
    sigma12 = conv(img1 * img2) - mu1_mu2
    v1 = 2.0 * sigma12 + C2
    v2 = sigma1_sq + sigma2_sq + C2
    ssim_map = (2 * mu1_mu2 + C1) * v1 / ((mu1_sq + mu2_sq + C1) * v2)
    return ssim_map.mean()


if __name__ == "__main__":
    key = jax.random.PRNGKey(0)
    k1, k2 = jax.random.split(key)
    H, W = 16, 16                                  # SSIM.forward takes a 2D image
    img1 = jax.random.uniform(k1, (H, W), dtype=jnp.float32)
    img2 = jax.random.uniform(k2, (H, W), dtype=jnp.float32)

    result = jax.jit(ssim_pallas)(img1, img2)
    result = jax.block_until_ready(result)

    ref = _ssim_ref_np(np.asarray(img1), np.asarray(img2))
    assert np.allclose(np.asarray(result), ref, rtol=1e-4, atol=1e-5), (float(result), ref)

    print("KERNEL_OK")
</pallas_src>

<mosaic_0001>
module attributes {stable_mosaic.version = 11 : i64} {
  func.func @kernel(%arg0: i32, %arg1: memref<2xf32, #tpu.memory_space<smem>>, %arg2: memref<16x16xf32, #tpu.memory_space<vmem>>, %arg3: memref<16x16xf32, #tpu.memory_space<vmem>>, %arg4: memref<16x16xf32, #tpu.memory_space<vmem>>, %arg5: memref<16x16xf32, #tpu.memory_space<vmem>>, %arg6: memref<1x8x128xf32, #tpu.memory_space<vmem>>, %arg7: memref<26x16xf32, #tpu.memory_space<vmem>>, %arg8: memref<26x16xf32, #tpu.memory_space<vmem>>) attributes {dimension_semantics = [#tpu.dimension_semantics<parallel>], iteration_bounds = array<i64: 1>, scalar_prefetch = 0 : i64, scratch_operands = 2 : i64, tpu.core_type = #tpu.core_type<tc>, window_params = [{transform_indices = @transform_0, window_bounds = array<i64: 2>}, {transform_indices = @transform_1, window_bounds = array<i64: 16, 16>}, {transform_indices = @transform_2, window_bounds = array<i64: 16, 16>}, {transform_indices = @transform_3, window_bounds = array<i64: 16, 16>}, {transform_indices = @transform_4, window_bounds = array<i64: 16, 16>}, {transform_indices = @transform_5, window_bounds = array<i64: 1, 8, 128>}]} {
    %c0 = arith.constant 0 : index
    %c0_0 = arith.constant 0 : index
    %0 = vector.load %arg2[%c0, %c0_0] : memref<16x16xf32, #tpu.memory_space<vmem>>, vector<16x16xf32>
    %c0_1 = arith.constant 0 : index
    %c0_2 = arith.constant 0 : index
    %1 = vector.load %arg7[%c0_1, %c0_2] : memref<26x16xf32, #tpu.memory_space<vmem>>, vector<16x16xf32>
    tpu.vector_store %arg7[%c0_1, %c0_2], %0 {strides = array<i32>} : memref<26x16xf32, #tpu.memory_space<vmem>>, vector<16x16xf32>,
    %c0_3 = arith.constant 0 : index
    %c0_4 = arith.constant 0 : index
    %2 = vector.load %arg3[%c0_3, %c0_4] : memref<16x16xf32, #tpu.memory_space<vmem>>, vector<10x16xf32>
    %c16 = arith.constant 16 : index
    %c0_5 = arith.constant 0 : index
    %3 = vector.load %arg7[%c16, %c0_5] : memref<26x16xf32, #tpu.memory_space<vmem>>, vector<10x16xf32>
    tpu.vector_store %arg7[%c16, %c0_5], %2 {strides = array<i32>} : memref<26x16xf32, #tpu.memory_space<vmem>>, vector<10x16xf32>,
    %c0_6 = arith.constant 0 : index
    %c0_7 = arith.constant 0 : index
    %4 = vector.load %arg4[%c0_6, %c0_7] : memref<16x16xf32, #tpu.memory_space<vmem>>, vector<16x16xf32>
    %c0_8 = arith.constant 0 : index
    %c0_9 = arith.constant 0 : index
    %5 = vector.load %arg8[%c0_8, %c0_9] : memref<26x16xf32, #tpu.memory_space<vmem>>, vector<16x16xf32>
    tpu.vector_store %arg8[%c0_8, %c0_9], %4 {strides = array<i32>} : memref<26x16xf32, #tpu.memory_space<vmem>>, vector<16x16xf32>,
    %c0_10 = arith.constant 0 : index
    %c0_11 = arith.constant 0 : index
    %6 = vector.load %arg5[%c0_10, %c0_11] : memref<16x16xf32, #tpu.memory_space<vmem>>, vector<10x16xf32>
    %c16_12 = arith.constant 16 : index
    %c0_13 = arith.constant 0 : index
    %7 = vector.load %arg8[%c16_12, %c0_13] : memref<26x16xf32, #tpu.memory_space<vmem>>, vector<10x16xf32>
    tpu.vector_store %arg8[%c16_12, %c0_13], %6 {strides = array<i32>} : memref<26x16xf32, #tpu.memory_space<vmem>>, vector<10x16xf32>,
    %c0_14 = arith.constant 0 : index
    %c0_15 = arith.constant 0 : index
    %8 = vector.load %arg7[%c0_14, %c0_15] : memref<26x16xf32, #tpu.memory_space<vmem>>, vector<26x16xf32>
    %c0_16 = arith.constant 0 : index
    %c0_17 = arith.constant 0 : index
    %9 = vector.load %arg8[%c0_16, %c0_17] : memref<26x16xf32, #tpu.memory_space<vmem>>, vector<26x16xf32>
    %10 = arith.mulf %8, %8 : vector<26x16xf32>
    %11 = arith.mulf %9, %9 : vector<26x16xf32>
    %12 = arith.mulf %8, %9 : vector<26x16xf32>
    %13 = vector.extract_strided_slice %8 {offsets = [0, 0], sizes = [16, 16], strides = [1, 1]} : vector<26x16xf32> to vector<16x16xf32>
    %cst = arith.constant 0.00102838012 : f32
    %14 = vector.broadcast %cst : f32 to vector<16x16xf32>
    %15 = arith.mulf %14, %13 : vector<16x16xf32>
    %16 = vector.extract_strided_slice %8 {offsets = [1, 0], sizes = [16, 16], strides = [1, 1]} : vector<26x16xf32> to vector<16x16xf32>
    %cst_18 = arith.constant 0.00759875821 : f32
    %17 = vector.broadcast %cst_18 : f32 to vector<16x16xf32>
    %18 = arith.mulf %17, %16 : vector<16x16xf32>
    %19 = arith.addf %15, %18 : vector<16x16xf32>
    %20 = vector.extract_strided_slice %8 {offsets = [2, 0], sizes = [16, 16], strides = [1, 1]} : vector<26x16xf32> to vector<16x16xf32>
    %cst_19 = arith.constant 0.0360007733 : f32
    %21 = vector.broadcast %cst_19 : f32 to vector<16x16xf32>
    %22 = arith.mulf %21, %20 : vector<16x16xf32>
    %23 = arith.addf %19, %22 : vector<16x16xf32>
    %24 = vector.extract_strided_slice %8 {offsets = [3, 0], sizes = [16, 16], strides = [1, 1]} : vector<26x16xf32> to vector<16x16xf32>
    %cst_20 = arith.constant 0.109360687 : f32
    %25 = vector.broadcast %cst_20 : f32 to vector<16x16xf32>
    %26 = arith.mulf %25, %24 : vector<16x16xf32>
    %27 = arith.addf %23, %26 : vector<16x16xf32>
    %28 = vector.extract_strided_slice %8 {offsets = [4, 0], sizes = [16, 16], strides = [1, 1]} : vector<26x16xf32> to vector<16x16xf32>
    %cst_21 = arith.constant 0.213005543 : f32
    %29 = vector.broadcast %cst_21 : f32 to vector<16x16xf32>
    %30 = arith.mulf %29, %28 : vector<16x16xf32>
    %31 = arith.addf %27, %30 : vector<16x16xf32>
    %32 = vector.extract_strided_slice %8 {offsets = [5, 0], sizes = [16, 16], strides = [1, 1]} : vector<26x16xf32> to vector<16x16xf32>
    %cst_22 = arith.constant 0.266011715 : f32
    %33 = vector.broadcast %cst_22 : f32 to vector<16x16xf32>
    %34 = arith.mulf %33, %32 : vector<16x16xf32>
    %35 = arith.addf %31, %34 : vector<16x16xf32>
    %36 = vector.extract_strided_slice %8 {offsets = [6, 0], sizes = [16, 16], strides = [1, 1]} : vector<26x16xf32> to vector<16x16xf32>
    %cst_23 = arith.constant 0.213005543 : f32
    %37 = vector.broadcast %cst_23 : f32 to vector<16x16xf32>
    %38 = arith.mulf %37, %36 : vector<16x16xf32>
    %39 = arith.addf %35, %38 : vector<16x16xf32>
    %40 = vector.extract_strided_slice %8 {offsets = [7, 0], sizes = [16, 16], strides = [1, 1]} : vector<26x16xf32> to vector<16x16xf32>
    %cst_24 = arith.constant 0.109360687 : f32
    %41 = vector.broadcast %cst_24 : f32 to vector<16x16xf32>
    %42 = arith.mulf %41, %40 : vector<16x16xf32>
    %43 = arith.addf %39, %42 : vector<16x16xf32>
    %44 = vector.extract_strided_slice %8 {offsets = [8, 0], sizes = [16, 16], strides = [1, 1]} : vector<26x16xf32> to vector<16x16xf32>
    %cst_25 = arith.constant 0.0360007733 : f32
    %45 = vector.broadcast %cst_25 : f32 to vector<16x16xf32>
    %46 = arith.mulf %45, %44 : vector<16x16xf32>
    %47 = arith.addf %43, %46 : vector<16x16xf32>
    %48 = vector.extract_strided_slice %8 {offsets = [9, 0], sizes = [16, 16], strides = [1, 1]} : vector<26x16xf32> to vector<16x16xf32>
    %cst_26 = arith.constant 0.00759875821 : f32
    %49 = vector.broadcast %cst_26 : f32 to vector<16x16xf32>
    %50 = arith.mulf %49, %48 : vector<16x16xf32>
    %51 = arith.addf %47, %50 : vector<16x16xf32>
    %52 = vector.extract_strided_slice %8 {offsets = [10, 0], sizes = [16, 16], strides = [1, 1]} : vector<26x16xf32> to vector<16x16xf32>
    %cst_27 = arith.constant 0.00102838012 : f32
    %53 = vector.broadcast %cst_27 : f32 to vector<16x16xf32>
    %54 = arith.mulf %53, %52 : vector<16x16xf32>
    %55 = arith.addf %51, %54 : vector<16x16xf32>
    %56 = vector.extract_strided_slice %9 {offsets = [0, 0], sizes = [16, 16], strides = [1, 1]} : vector<26x16xf32> to vector<16x16xf32>
    %cst_28 = arith.constant 0.00102838012 : f32
    %57 = vector.broadcast %cst_28 : f32 to vector<16x16xf32>
    %58 = arith.mulf %57, %56 : vector<16x16xf32>
    %59 = vector.extract_strided_slice %9 {offsets = [1, 0], sizes = [16, 16], strides = [1, 1]} : vector<26x16xf32> to vector<16x16xf32>
    %cst_29 = arith.constant 0.00759875821 : f32
    %60 = vector.broadcast %cst_29 : f32 to vector<16x16xf32>
    %61 = arith.mulf %60, %59 : vector<16x16xf32>
    %62 = arith.addf %58, %61 : vector<16x16xf32>
    %63 = vector.extract_strided_slice %9 {offsets = [2, 0], sizes = [16, 16], strides = [1, 1]} : vector<26x16xf32> to vector<16x16xf32>
    %cst_30 = arith.constant 0.0360007733 : f32
    %64 = vector.broadcast %cst_30 : f32 to vector<16x16xf32>
    %65 = arith.mulf %64, %63 : vector<16x16xf32>
    %66 = arith.addf %62, %65 : vector<16x16xf32>
    %67 = vector.extract_strided_slice %9 {offsets = [3, 0], sizes = [16, 16], strides = [1, 1]} : vector<26x16xf32> to vector<16x16xf32>
    %cst_31 = arith.constant 0.109360687 : f32
    %68 = vector.broadcast %cst_31 : f32 to vector<16x16xf32>
    %69 = arith.mulf %68, %67 : vector<16x16xf32>
    %70 = arith.addf %66, %69 : vector<16x16xf32>
    %71 = vector.extract_strided_slice %9 {offsets = [4, 0], sizes = [16, 16], strides = [1, 1]} : vector<26x16xf32> to vector<16x16xf32>
    %cst_32 = arith.constant 0.213005543 : f32
    %72 = vector.broadcast %cst_32 : f32 to vector<16x16xf32>
    %73 = arith.mulf %72, %71 : vector<16x16xf32>
    %74 = arith.addf %70, %73 : vector<16x16xf32>
    %75 = vector.extract_strided_slice %9 {offsets = [5, 0], sizes = [16, 16], strides = [1, 1]} : vector<26x16xf32> to vector<16x16xf32>
    %cst_33 = arith.constant 0.266011715 : f32
    %76 = vector.broadcast %cst_33 : f32 to vector<16x16xf32>
    %77 = arith.mulf %76, %75 : vector<16x16xf32>
    %78 = arith.addf %74, %77 : vector<16x16xf32>
    %79 = vector.extract_strided_slice %9 {offsets = [6, 0], sizes = [16, 16], strides = [1, 1]} : vector<26x16xf32> to vector<16x16xf32>
    %cst_34 = arith.constant 0.213005543 : f32
    %80 = vector.broadcast %cst_34 : f32 to vector<16x16xf32>
    %81 = arith.mulf %80, %79 : vector<16x16xf32>
    %82 = arith.addf %78, %81 : vector<16x16xf32>
    %83 = vector.extract_strided_slice %9 {offsets = [7, 0], sizes = [16, 16], strides = [1, 1]} : vector<26x16xf32> to vector<16x16xf32>
    %cst_35 = arith.constant 0.109360687 : f32
    %84 = vector.broadcast %cst_35 : f32 to vector<16x16xf32>
    %85 = arith.mulf %84, %83 : vector<16x16xf32>
    %86 = arith.addf %82, %85 : vector<16x16xf32>
    %87 = vector.extract_strided_slice %9 {offsets = [8, 0], sizes = [16, 16], strides = [1, 1]} : vector<26x16xf32> to vector<16x16xf32>
    %cst_36 = arith.constant 0.0360007733 : f32
    %88 = vector.broadcast %cst_36 : f32 to vector<16x16xf32>
    %89 = arith.mulf %88, %87 : vector<16x16xf32>
    %90 = arith.addf %86, %89 : vector<16x16xf32>
    %91 = vector.extract_strided_slice %9 {offsets = [9, 0], sizes = [16, 16], strides = [1, 1]} : vector<26x16xf32> to vector<16x16xf32>
    %cst_37 = arith.constant 0.00759875821 : f32
    %92 = vector.broadcast %cst_37 : f32 to vector<16x16xf32>
    %93 = arith.mulf %92, %91 : vector<16x16xf32>
    %94 = arith.addf %90, %93 : vector<16x16xf32>
    %95 = vector.extract_strided_slice %9 {offsets = [10, 0], sizes = [16, 16], strides = [1, 1]} : vector<26x16xf32> to vector<16x16xf32>
    %cst_38 = arith.constant 0.00102838012 : f32
    %96 = vector.broadcast %cst_38 : f32 to vector<16x16xf32>
    %97 = arith.mulf %96, %95 : vector<16x16xf32>
    %98 = arith.addf %94, %97 : vector<16x16xf32>
    %99 = vector.extract_strided_slice %10 {offsets = [0, 0], sizes = [16, 16], strides = [1, 1]} : vector<26x16xf32> to vector<16x16xf32>
    %cst_39 = arith.constant 0.00102838012 : f32
    %100 = vector.broadcast %cst_39 : f32 to vector<16x16xf32>
    %101 = arith.mulf %100, %99 : vector<16x16xf32>
    %102 = vector.extract_strided_slice %10 {offsets = [1, 0], sizes = [16, 16], strides = [1, 1]} : vector<26x16xf32> to vector<16x16xf32>
    %cst_40 = arith.constant 0.00759875821 : f32
    %103 = vector.broadcast %cst_40 : f32 to vector<16x16xf32>
    %104 = arith.mulf %103, %102 : vector<16x16xf32>
    %105 = arith.addf %101, %104 : vector<16x16xf32>
    %106 = vector.extract_strided_slice %10 {offsets = [2, 0], sizes = [16, 16], strides = [1, 1]} : vector<26x16xf32> to vector<16x16xf32>
    %cst_41 = arith.constant 0.0360007733 : f32
    %107 = vector.broadcast %cst_41 : f32 to vector<16x16xf32>
    %108 = arith.mulf %107, %106 : vector<16x16xf32>
    %109 = arith.addf %105, %108 : vector<16x16xf32>
    %110 = vector.extract_strided_slice %10 {offsets = [3, 0], sizes = [16, 16], strides = [1, 1]} : vector<26x16xf32> to vector<16x16xf32>
    %cst_42 = arith.constant 0.109360687 : f32
    %111 = vector.broadcast %cst_42 : f32 to vector<16x16xf32>
    %112 = arith.mulf %111, %110 : vector<16x16xf32>
    %113 = arith.addf %109, %112 : vector<16x16xf32>
    %114 = vector.extract_strided_slice %10 {offsets = [4, 0], sizes = [16, 16], strides = [1, 1]} : vector<26x16xf32> to vector<16x16xf32>
    %cst_43 = arith.constant 0.213005543 : f32
    %115 = vector.broadcast %cst_43 : f32 to vector<16x16xf32>
    %116 = arith.mulf %115, %114 : vector<16x16xf32>
    %117 = arith.addf %113, %116 : vector<16x16xf32>
    %118 = vector.extract_strided_slice %10 {offsets = [5, 0], sizes = [16, 16], strides = [1, 1]} : vector<26x16xf32> to vector<16x16xf32>
    %cst_44 = arith.constant 0.266011715 : f32
    %119 = vector.broadcast %cst_44 : f32 to vector<16x16xf32>
    %120 = arith.mulf %119, %118 : vector<16x16xf32>
    %121 = arith.addf %117, %120 : vector<16x16xf32>
    %122 = vector.extract_strided_slice %10 {offsets = [6, 0], sizes = [16, 16], strides = [1, 1]} : vector<26x16xf32> to vector<16x16xf32>
    %cst_45 = arith.constant 0.213005543 : f32
    %123 = vector.broadcast %cst_45 : f32 to vector<16x16xf32>
    %124 = arith.mulf %123, %122 : vector<16x16xf32>
    %125 = arith.addf %121, %124 : vector<16x16xf32>
    %126 = vector.extract_strided_slice %10 {offsets = [7, 0], sizes = [16, 16], strides = [1, 1]} : vector<26x16xf32> to vector<16x16xf32>
    %cst_46 = arith.constant 0.109360687 : f32
    %127 = vector.broadcast %cst_46 : f32 to vector<16x16xf32>
    %128 = arith.mulf %127, %126 : vector<16x16xf32>
    %129 = arith.addf %125, %128 : vector<16x16xf32>
    %130 = vector.extract_strided_slice %10 {offsets = [8, 0], sizes = [16, 16], strides = [1, 1]} : vector<26x16xf32> to vector<16x16xf32>
    %cst_47 = arith.constant 0.0360007733 : f32
    %131 = vector.broadcast %cst_47 : f32 to vector<16x16xf32>
    %132 = arith.mulf %131, %130 : vector<16x16xf32>
    %133 = arith.addf %129, %132 : vector<16x16xf32>
    %134 = vector.extract_strided_slice %10 {offsets = [9, 0], sizes = [16, 16], strides = [1, 1]} : vector<26x16xf32> to vector<16x16xf32>
    %cst_48 = arith.constant 0.00759875821 : f32
    %135 = vector.broadcast %cst_48 : f32 to vector<16x16xf32>
    %136 = arith.mulf %135, %134 : vector<16x16xf32>
    %137 = arith.addf %133, %136 : vector<16x16xf32>
    %138 = vector.extract_strided_slice %10 {offsets = [10, 0], sizes = [16, 16], strides = [1, 1]} : vector<26x16xf32> to vector<16x16xf32>
    %cst_49 = arith.constant 0.00102838012 : f32
    %139 = vector.broadcast %cst_49 : f32 to vector<16x16xf32>
    %140 = arith.mulf %139, %138 : vector<16x16xf32>
    %141 = arith.addf %137, %140 : vector<16x16xf32>
    %142 = vector.extract_strided_slice %11 {offsets = [0, 0], sizes = [16, 16], strides = [1, 1]} : vector<26x16xf32> to vector<16x16xf32>
    %cst_50 = arith.constant 0.00102838012 : f32
    %143 = vector.broadcast %cst_50 : f32 to vector<16x16xf32>
    %144 = arith.mulf %143, %142 : vector<16x16xf32>
    %145 = vector.extract_strided_slice %11 {offsets = [1, 0], sizes = [16, 16], strides = [1, 1]} : vector<26x16xf32> to vector<16x16xf32>
    %cst_51 = arith.constant 0.00759875821 : f32
    %146 = vector.broadcast %cst_51 : f32 to vector<16x16xf32>
    %147 = arith.mulf %146, %145 : vector<16x16xf32>
    %148 = arith.addf %144, %147 : vector<16x16xf32>
    %149 = vector.extract_strided_slice %11 {offsets = [2, 0], sizes = [16, 16], strides = [1, 1]} : vector<26x16xf32> to vector<16x16xf32>
    %cst_52 = arith.constant 0.0360007733 : f32
    %150 = vector.broadcast %cst_52 : f32 to vector<16x16xf32>
    %151 = arith.mulf %150, %149 : vector<16x16xf32>
    %152 = arith.addf %148, %151 : vector<16x16xf32>
    %153 = vector.extract_strided_slice %11 {offsets = [3, 0], sizes = [16, 16], strides = [1, 1]} : vector<26x16xf32> to vector<16x16xf32>
    %cst_53 = arith.constant 0.109360687 : f32
    %154 = vector.broadcast %cst_53 : f32 to vector<16x16xf32>
    %155 = arith.mulf %154, %153 : vector<16x16xf32>
    %156 = arith.addf %152, %155 : vector<16x16xf32>
    %157 = vector.extract_strided_slice %11 {offsets = [4, 0], sizes = [16, 16], strides = [1, 1]} : vector<26x16xf32> to vector<16x16xf32>
    %cst_54 = arith.constant 0.213005543 : f32
    %158 = vector.broadcast %cst_54 : f32 to vector<16x16xf32>
    %159 = arith.mulf %158, %157 : vector<16x16xf32>
    %160 = arith.addf %156, %159 : vector<16x16xf32>
    %161 = vector.extract_strided_slice %11 {offsets = [5, 0], sizes = [16, 16], strides = [1, 1]} : vector<26x16xf32> to vector<16x16xf32>
    %cst_55 = arith.constant 0.266011715 : f32
    %162 = vector.broadcast %cst_55 : f32 to vector<16x16xf32>
    %163 = arith.mulf %162, %161 : vector<16x16xf32>
    %164 = arith.addf %160, %163 : vector<16x16xf32>
    %165 = vector.extract_strided_slice %11 {offsets = [6, 0], sizes = [16, 16], strides = [1, 1]} : vector<26x16xf32> to vector<16x16xf32>
    %cst_56 = arith.constant 0.213005543 : f32
    %166 = vector.broadcast %cst_56 : f32 to vector<16x16xf32>
    %167 = arith.mulf %166, %165 : vector<16x16xf32>
    %168 = arith.addf %164, %167 : vector<16x16xf32>
    %169 = vector.extract_strided_slice %11 {offsets = [7, 0], sizes = [16, 16], strides = [1, 1]} : vector<26x16xf32> to vector<16x16xf32>
    %cst_57 = arith.constant 0.109360687 : f32
    %170 = vector.broadcast %cst_57 : f32 to vector<16x16xf32>
    %171 = arith.mulf %170, %169 : vector<16x16xf32>
    %172 = arith.addf %168, %171 : vector<16x16xf32>
    %173 = vector.extract_strided_slice %11 {offsets = [8, 0], sizes = [16, 16], strides = [1, 1]} : vector<26x16xf32> to vector<16x16xf32>
    %cst_58 = arith.constant 0.0360007733 : f32
    %174 = vector.broadcast %cst_58 : f32 to vector<16x16xf32>
    %175 = arith.mulf %174, %173 : vector<16x16xf32>
    %176 = arith.addf %172, %175 : vector<16x16xf32>
    %177 = vector.extract_strided_slice %11 {offsets = [9, 0], sizes = [16, 16], strides = [1, 1]} : vector<26x16xf32> to vector<16x16xf32>
    %cst_59 = arith.constant 0.00759875821 : f32
    %178 = vector.broadcast %cst_59 : f32 to vector<16x16xf32>
    %179 = arith.mulf %178, %177 : vector<16x16xf32>
    %180 = arith.addf %176, %179 : vector<16x16xf32>
    %181 = vector.extract_strided_slice %11 {offsets = [10, 0], sizes = [16, 16], strides = [1, 1]} : vector<26x16xf32> to vector<16x16xf32>
    %cst_60 = arith.constant 0.00102838012 : f32
    %182 = vector.broadcast %cst_60 : f32 to vector<16x16xf32>
    %183 = arith.mulf %182, %181 : vector<16x16xf32>
    %184 = arith.addf %180, %183 : vector<16x16xf32>
    %185 = vector.extract_strided_slice %12 {offsets = [0, 0], sizes = [16, 16], strides = [1, 1]} : vector<26x16xf32> to vector<16x16xf32>
    %cst_61 = arith.constant 0.00102838012 : f32
    %186 = vector.broadcast %cst_61 : f32 to vector<16x16xf32>
    %187 = arith.mulf %186, %185 : vector<16x16xf32>
    %188 = vector.extract_strided_slice %12 {offsets = [1, 0], sizes = [16, 16], strides = [1, 1]} : vector<26x16xf32> to vector<16x16xf32>
    %cst_62 = arith.constant 0.00759875821 : f32
    %189 = vector.broadcast %cst_62 : f32 to vector<16x16xf32>
    %190 = arith.mulf %189, %188 : vector<16x16xf32>
    %191 = arith.addf %187, %190 : vector<16x16xf32>
    %192 = vector.extract_strided_slice %12 {offsets = [2, 0], sizes = [16, 16], strides = [1, 1]} : vector<26x16xf32> to vector<16x16xf32>
    %cst_63 = arith.constant 0.0360007733 : f32
    %193 = vector.broadcast %cst_63 : f32 to vector<16x16xf32>
    %194 = arith.mulf %193, %192 : vector<16x16xf32>
    %195 = arith.addf %191, %194 : vector<16x16xf32>
    %196 = vector.extract_strided_slice %12 {offsets = [3, 0], sizes = [16, 16], strides = [1, 1]} : vector<26x16xf32> to vector<16x16xf32>
    %cst_64 = arith.constant 0.109360687 : f32
    %197 = vector.broadcast %cst_64 : f32 to vector<16x16xf32>
    %198 = arith.mulf %197, %196 : vector<16x16xf32>
    %199 = arith.addf %195, %198 : vector<16x16xf32>
    %200 = vector.extract_strided_slice %12 {offsets = [4, 0], sizes = [16, 16], strides = [1, 1]} : vector<26x16xf32> to vector<16x16xf32>
    %cst_65 = arith.constant 0.213005543 : f32
    %201 = vector.broadcast %cst_65 : f32 to vector<16x16xf32>
    %202 = arith.mulf %201, %200 : vector<16x16xf32>
    %203 = arith.addf %199, %202 : vector<16x16xf32>
    %204 = vector.extract_strided_slice %12 {offsets = [5, 0], sizes = [16, 16], strides = [1, 1]} : vector<26x16xf32> to vector<16x16xf32>
    %cst_66 = arith.constant 0.266011715 : f32
    %205 = vector.broadcast %cst_66 : f32 to vector<16x16xf32>
    %206 = arith.mulf %205, %204 : vector<16x16xf32>
    %207 = arith.addf %203, %206 : vector<16x16xf32>
    %208 = vector.extract_strided_slice %12 {offsets = [6, 0], sizes = [16, 16], strides = [1, 1]} : vector<26x16xf32> to vector<16x16xf32>
    %cst_67 = arith.constant 0.213005543 : f32
    %209 = vector.broadcast %cst_67 : f32 to vector<16x16xf32>
    %210 = arith.mulf %209, %208 : vector<16x16xf32>
    %211 = arith.addf %207, %210 : vector<16x16xf32>
    %212 = vector.extract_strided_slice %12 {offsets = [7, 0], sizes = [16, 16], strides = [1, 1]} : vector<26x16xf32> to vector<16x16xf32>
    %cst_68 = arith.constant 0.109360687 : f32
    %213 = vector.broadcast %cst_68 : f32 to vector<16x16xf32>
    %214 = arith.mulf %213, %212 : vector<16x16xf32>
    %215 = arith.addf %211, %214 : vector<16x16xf32>
    %216 = vector.extract_strided_slice %12 {offsets = [8, 0], sizes = [16, 16], strides = [1, 1]} : vector<26x16xf32> to vector<16x16xf32>
    %cst_69 = arith.constant 0.0360007733 : f32
    %217 = vector.broadcast %cst_69 : f32 to vector<16x16xf32>
    %218 = arith.mulf %217, %216 : vector<16x16xf32>
    %219 = arith.addf %215, %218 : vector<16x16xf32>
    %220 = vector.extract_strided_slice %12 {offsets = [9, 0], sizes = [16, 16], strides = [1, 1]} : vector<26x16xf32> to vector<16x16xf32>
    %cst_70 = arith.constant 0.00759875821 : f32
    %221 = vector.broadcast %cst_70 : f32 to vector<16x16xf32>
    %222 = arith.mulf %221, %220 : vector<16x16xf32>
    %223 = arith.addf %219, %222 : vector<16x16xf32>
    %224 = vector.extract_strided_slice %12 {offsets = [10, 0], sizes = [16, 16], strides = [1, 1]} : vector<26x16xf32> to vector<16x16xf32>
    %cst_71 = arith.constant 0.00102838012 : f32
    %225 = vector.broadcast %cst_71 : f32 to vector<16x16xf32>
    %226 = arith.mulf %225, %224 : vector<16x16xf32>
    %227 = arith.addf %223, %226 : vector<16x16xf32>
    %228 = vector.extract_strided_slice %55 {offsets = [0, 0], sizes = [16, 6], strides = [1, 1]} : vector<16x16xf32> to vector<16x6xf32>
    %cst_72 = arith.constant 0.00102838012 : f32
    %229 = vector.broadcast %cst_72 : f32 to vector<16x6xf32>
    %230 = arith.mulf %229, %228 : vector<16x6xf32>
    %231 = vector.extract_strided_slice %55 {offsets = [0, 1], sizes = [16, 6], strides = [1, 1]} : vector<16x16xf32> to vector<16x6xf32>
    %cst_73 = arith.constant 0.00759875821 : f32
    %232 = vector.broadcast %cst_73 : f32 to vector<16x6xf32>
    %233 = arith.mulf %232, %231 : vector<16x6xf32>
    %234 = arith.addf %230, %233 : vector<16x6xf32>
    %235 = vector.extract_strided_slice %55 {offsets = [0, 2], sizes = [16, 6], strides = [1, 1]} : vector<16x16xf32> to vector<16x6xf32>
    %cst_74 = arith.constant 0.0360007733 : f32
    %236 = vector.broadcast %cst_74 : f32 to vector<16x6xf32>
    %237 = arith.mulf %236, %235 : vector<16x6xf32>
    %238 = arith.addf %234, %237 : vector<16x6xf32>
    %239 = vector.extract_strided_slice %55 {offsets = [0, 3], sizes = [16, 6], strides = [1, 1]} : vector<16x16xf32> to vector<16x6xf32>
    %cst_75 = arith.constant 0.109360687 : f32
    %240 = vector.broadcast %cst_75 : f32 to vector<16x6xf32>
    %241 = arith.mulf %240, %239 : vector<16x6xf32>
    %242 = arith.addf %238, %241 : vector<16x6xf32>
    %243 = vector.extract_strided_slice %55 {offsets = [0, 4], sizes = [16, 6], strides = [1, 1]} : vector<16x16xf32> to vector<16x6xf32>
    %cst_76 = arith.constant 0.213005543 : f32
    %244 = vector.broadcast %cst_76 : f32 to vector<16x6xf32>
    %245 = arith.mulf %244, %243 : vector<16x6xf32>
    %246 = arith.addf %242, %245 : vector<16x6xf32>
    %247 = vector.extract_strided_slice %55 {offsets = [0, 5], sizes = [16, 6], strides = [1, 1]} : vector<16x16xf32> to vector<16x6xf32>
    %cst_77 = arith.constant 0.266011715 : f32
    %248 = vector.broadcast %cst_77 : f32 to vector<16x6xf32>
    %249 = arith.mulf %248, %247 : vector<16x6xf32>
    %250 = arith.addf %246, %249 : vector<16x6xf32>
    %251 = vector.extract_strided_slice %55 {offsets = [0, 6], sizes = [16, 6], strides = [1, 1]} : vector<16x16xf32> to vector<16x6xf32>
    %cst_78 = arith.constant 0.213005543 : f32
    %252 = vector.broadcast %cst_78 : f32 to vector<16x6xf32>
    %253 = arith.mulf %252, %251 : vector<16x6xf32>
    %254 = arith.addf %250, %253 : vector<16x6xf32>
    %255 = vector.extract_strided_slice %55 {offsets = [0, 7], sizes = [16, 6], strides = [1, 1]} : vector<16x16xf32> to vector<16x6xf32>
    %cst_79 = arith.constant 0.109360687 : f32
    %256 = vector.broadcast %cst_79 : f32 to vector<16x6xf32>
    %257 = arith.mulf %256, %255 : vector<16x6xf32>
    %258 = arith.addf %254, %257 : vector<16x6xf32>
    %259 = vector.extract_strided_slice %55 {offsets = [0, 8], sizes = [16, 6], strides = [1, 1]} : vector<16x16xf32> to vector<16x6xf32>
    %cst_80 = arith.constant 0.0360007733 : f32
    %260 = vector.broadcast %cst_80 : f32 to vector<16x6xf32>
    %261 = arith.mulf %260, %259 : vector<16x6xf32>
    %262 = arith.addf %258, %261 : vector<16x6xf32>
    %263 = vector.extract_strided_slice %55 {offsets = [0, 9], sizes = [16, 6], strides = [1, 1]} : vector<16x16xf32> to vector<16x6xf32>
    %cst_81 = arith.constant 0.00759875821 : f32
    %264 = vector.broadcast %cst_81 : f32 to vector<16x6xf32>
    %265 = arith.mulf %264, %263 : vector<16x6xf32>
    %266 = arith.addf %262, %265 : vector<16x6xf32>
    %267 = vector.extract_strided_slice %55 {offsets = [0, 10], sizes = [16, 6], strides = [1, 1]} : vector<16x16xf32> to vector<16x6xf32>
    %cst_82 = arith.constant 0.00102838012 : f32
    %268 = vector.broadcast %cst_82 : f32 to vector<16x6xf32>
    %269 = arith.mulf %268, %267 : vector<16x6xf32>
    %270 = arith.addf %266, %269 : vector<16x6xf32>
    %271 = vector.extract_strided_slice %98 {offsets = [0, 0], sizes = [16, 6], strides = [1, 1]} : vector<16x16xf32> to vector<16x6xf32>
    %cst_83 = arith.constant 0.00102838012 : f32
    %272 = vector.broadcast %cst_83 : f32 to vector<16x6xf32>
    %273 = arith.mulf %272, %271 : vector<16x6xf32>
    %274 = vector.extract_strided_slice %98 {offsets = [0, 1], sizes = [16, 6], strides = [1, 1]} : vector<16x16xf32> to vector<16x6xf32>
    %cst_84 = arith.constant 0.00759875821 : f32
    %275 = vector.broadcast %cst_84 : f32 to vector<16x6xf32>
    %276 = arith.mulf %275, %274 : vector<16x6xf32>
    %277 = arith.addf %273, %276 : vector<16x6xf32>
    %278 = vector.extract_strided_slice %98 {offsets = [0, 2], sizes = [16, 6], strides = [1, 1]} : vector<16x16xf32> to vector<16x6xf32>
    %cst_85 = arith.constant 0.0360007733 : f32
    %279 = vector.broadcast %cst_85 : f32 to vector<16x6xf32>
    %280 = arith.mulf %279, %278 : vector<16x6xf32>
    %281 = arith.addf %277, %280 : vector<16x6xf32>
    %282 = vector.extract_strided_slice %98 {offsets = [0, 3], sizes = [16, 6], strides = [1, 1]} : vector<16x16xf32> to vector<16x6xf32>
    %cst_86 = arith.constant 0.109360687 : f32
    %283 = vector.broadcast %cst_86 : f32 to vector<16x6xf32>
    %284 = arith.mulf %283, %282 : vector<16x6xf32>
    %285 = arith.addf %281, %284 : vector<16x6xf32>
    %286 = vector.extract_strided_slice %98 {offsets = [0, 4], sizes = [16, 6], strides = [1, 1]} : vector<16x16xf32> to vector<16x6xf32>
    %cst_87 = arith.constant 0.213005543 : f32
    %287 = vector.broadcast %cst_87 : f32 to vector<16x6xf32>
    %288 = arith.mulf %287, %286 : vector<16x6xf32>
    %289 = arith.addf %285, %288 : vector<16x6xf32>
    %290 = vector.extract_strided_slice %98 {offsets = [0, 5], sizes = [16, 6], strides = [1, 1]} : vector<16x16xf32> to vector<16x6xf32>
    %cst_88 = arith.constant 0.266011715 : f32
    %291 = vector.broadcast %cst_88 : f32 to vector<16x6xf32>
    %292 = arith.mulf %291, %290 : vector<16x6xf32>
    %293 = arith.addf %289, %292 : vector<16x6xf32>
    %294 = vector.extract_strided_slice %98 {offsets = [0, 6], sizes = [16, 6], strides = [1, 1]} : vector<16x16xf32> to vector<16x6xf32>
    %cst_89 = arith.constant 0.213005543 : f32
    %295 = vector.broadcast %cst_89 : f32 to vector<16x6xf32>
    %296 = arith.mulf %295, %294 : vector<16x6xf32>
    %297 = arith.addf %293, %296 : vector<16x6xf32>
    %298 = vector.extract_strided_slice %98 {offsets = [0, 7], sizes = [16, 6], strides = [1, 1]} : vector<16x16xf32> to vector<16x6xf32>
    %cst_90 = arith.constant 0.109360687 : f32
    %299 = vector.broadcast %cst_90 : f32 to vector<16x6xf32>
    %300 = arith.mulf %299, %298 : vector<16x6xf32>
    %301 = arith.addf %297, %300 : vector<16x6xf32>
    %302 = vector.extract_strided_slice %98 {offsets = [0, 8], sizes = [16, 6], strides = [1, 1]} : vector<16x16xf32> to vector<16x6xf32>
    %cst_91 = arith.constant 0.0360007733 : f32
    %303 = vector.broadcast %cst_91 : f32 to vector<16x6xf32>
    %304 = arith.mulf %303, %302 : vector<16x6xf32>
    %305 = arith.addf %301, %304 : vector<16x6xf32>
    %306 = vector.extract_strided_slice %98 {offsets = [0, 9], sizes = [16, 6], strides = [1, 1]} : vector<16x16xf32> to vector<16x6xf32>
    %cst_92 = arith.constant 0.00759875821 : f32
    %307 = vector.broadcast %cst_92 : f32 to vector<16x6xf32>
    %308 = arith.mulf %307, %306 : vector<16x6xf32>
    %309 = arith.addf %305, %308 : vector<16x6xf32>
    %310 = vector.extract_strided_slice %98 {offsets = [0, 10], sizes = [16, 6], strides = [1, 1]} : vector<16x16xf32> to vector<16x6xf32>
    %cst_93 = arith.constant 0.00102838012 : f32
    %311 = vector.broadcast %cst_93 : f32 to vector<16x6xf32>
    %312 = arith.mulf %311, %310 : vector<16x6xf32>
    %313 = arith.addf %309, %312 : vector<16x6xf32>
    %314 = vector.extract_strided_slice %141 {offsets = [0, 0], sizes = [16, 6], strides = [1, 1]} : vector<16x16xf32> to vector<16x6xf32>
    %cst_94 = arith.constant 0.00102838012 : f32
    %315 = vector.broadcast %cst_94 : f32 to vector<16x6xf32>
    %316 = arith.mulf %315, %314 : vector<16x6xf32>
    %317 = vector.extract_strided_slice %141 {offsets = [0, 1], sizes = [16, 6], strides = [1, 1]} : vector<16x16xf32> to vector<16x6xf32>
    %cst_95 = arith.constant 0.00759875821 : f32
    %318 = vector.broadcast %cst_95 : f32 to vector<16x6xf32>
    %319 = arith.mulf %318, %317 : vector<16x6xf32>
    %320 = arith.addf %316, %319 : vector<16x6xf32>
    %321 = vector.extract_strided_slice %141 {offsets = [0, 2], sizes = [16, 6], strides = [1, 1]} : vector<16x16xf32> to vector<16x6xf32>
    %cst_96 = arith.constant 0.0360007733 : f32
    %322 = vector.broadcast %cst_96 : f32 to vector<16x6xf32>
    %323 = arith.mulf %322, %321 : vector<16x6xf32>
    %324 = arith.addf %320, %323 : vector<16x6xf32>
    %325 = vector.extract_strided_slice %141 {offsets = [0, 3], sizes = [16, 6], strides = [1, 1]} : vector<16x16xf32> to vector<16x6xf32>
    %cst_97 = arith.constant 0.109360687 : f32
    %326 = vector.broadcast %cst_97 : f32 to vector<16x6xf32>
    %327 = arith.mulf %326, %325 : vector<16x6xf32>
    %328 = arith.addf %324, %327 : vector<16x6xf32>
    %329 = vector.extract_strided_slice %141 {offsets = [0, 4], sizes = [16, 6], strides = [1, 1]} : vector<16x16xf32> to vector<16x6xf32>
    %cst_98 = arith.constant 0.213005543 : f32
    %330 = vector.broadcast %cst_98 : f32 to vector<16x6xf32>
    %331 = arith.mulf %330, %329 : vector<16x6xf32>
    %332 = arith.addf %328, %331 : vector<16x6xf32>
    %333 = vector.extract_strided_slice %141 {offsets = [0, 5], sizes = [16, 6], strides = [1, 1]} : vector<16x16xf32> to vector<16x6xf32>
    %cst_99 = arith.constant 0.266011715 : f32
    %334 = vector.broadcast %cst_99 : f32 to vector<16x6xf32>
    %335 = arith.mulf %334, %333 : vector<16x6xf32>
    %336 = arith.addf %332, %335 : vector<16x6xf32>
    %337 = vector.extract_strided_slice %141 {offsets = [0, 6], sizes = [16, 6], strides = [1, 1]} : vector<16x16xf32> to vector<16x6xf32>
    %cst_100 = arith.constant 0.213005543 : f32
    %338 = vector.broadcast %cst_100 : f32 to vector<16x6xf32>
    %339 = arith.mulf %338, %337 : vector<16x6xf32>
    %340 = arith.addf %336, %339 : vector<16x6xf32>
    %341 = vector.extract_strided_slice %141 {offsets = [0, 7], sizes = [16, 6], strides = [1, 1]} : vector<16x16xf32> to vector<16x6xf32>
    %cst_101 = arith.constant 0.109360687 : f32
    %342 = vector.broadcast %cst_101 : f32 to vector<16x6xf32>
    %343 = arith.mulf %342, %341 : vector<16x6xf32>
    %344 = arith.addf %340, %343 : vector<16x6xf32>
    %345 = vector.extract_strided_slice %141 {offsets = [0, 8], sizes = [16, 6], strides = [1, 1]} : vector<16x16xf32> to vector<16x6xf32>
    %cst_102 = arith.constant 0.0360007733 : f32
    %346 = vector.broadcast %cst_102 : f32 to vector<16x6xf32>
    %347 = arith.mulf %346, %345 : vector<16x6xf32>
    %348 = arith.addf %344, %347 : vector<16x6xf32>
    %349 = vector.extract_strided_slice %141 {offsets = [0, 9], sizes = [16, 6], strides = [1, 1]} : vector<16x16xf32> to vector<16x6xf32>
    %cst_103 = arith.constant 0.00759875821 : f32
    %350 = vector.broadcast %cst_103 : f32 to vector<16x6xf32>
    %351 = arith.mulf %350, %349 : vector<16x6xf32>
    %352 = arith.addf %348, %351 : vector<16x6xf32>
    %353 = vector.extract_strided_slice %141 {offsets = [0, 10], sizes = [16, 6], strides = [1, 1]} : vector<16x16xf32> to vector<16x6xf32>
    %cst_104 = arith.constant 0.00102838012 : f32
    %354 = vector.broadcast %cst_104 : f32 to vector<16x6xf32>
    %355 = arith.mulf %354, %353 : vector<16x6xf32>
    %356 = arith.addf %352, %355 : vector<16x6xf32>
    %357 = vector.extract_strided_slice %184 {offsets = [0, 0], sizes = [16, 6], strides = [1, 1]} : vector<16x16xf32> to vector<16x6xf32>
    %cst_105 = arith.constant 0.00102838012 : f32
    %358 = vector.broadcast %cst_105 : f32 to vector<16x6xf32>
    %359 = arith.mulf %358, %357 : vector<16x6xf32>
    %360 = vector.extract_strided_slice %184 {offsets = [0, 1], sizes = [16, 6], strides = [1, 1]} : vector<16x16xf32> to vector<16x6xf32>
    %cst_106 = arith.constant 0.00759875821 : f32
    %361 = vector.broadcast %cst_106 : f32 to vector<16x6xf32>
    %362 = arith.mulf %361, %360 : vector<16x6xf32>
    %363 = arith.addf %359, %362 : vector<16x6xf32>
    %364 = vector.extract_strided_slice %184 {offsets = [0, 2], sizes = [16, 6], strides = [1, 1]} : vector<16x16xf32> to vector<16x6xf32>
    %cst_107 = arith.constant 0.0360007733 : f32
    %365 = vector.broadcast %cst_107 : f32 to vector<16x6xf32>
    %366 = arith.mulf %365, %364 : vector<16x6xf32>
    %367 = arith.addf %363, %366 : vector<16x6xf32>
    %368 = vector.extract_strided_slice %184 {offsets = [0, 3], sizes = [16, 6], strides = [1, 1]} : vector<16x16xf32> to vector<16x6xf32>
    %cst_108 = arith.constant 0.109360687 : f32
    %369 = vector.broadcast %cst_108 : f32 to vector<16x6xf32>
    %370 = arith.mulf %369, %368 : vector<16x6xf32>
    %371 = arith.addf %367, %370 : vector<16x6xf32>
    %372 = vector.extract_strided_slice %184 {offsets = [0, 4], sizes = [16, 6], strides = [1, 1]} : vector<16x16xf32> to vector<16x6xf32>
    %cst_109 = arith.constant 0.213005543 : f32
    %373 = vector.broadcast %cst_109 : f32 to vector<16x6xf32>
    %374 = arith.mulf %373, %372 : vector<16x6xf32>
    %375 = arith.addf %371, %374 : vector<16x6xf32>
    %376 = vector.extract_strided_slice %184 {offsets = [0, 5], sizes = [16, 6], strides = [1, 1]} : vector<16x16xf32> to vector<16x6xf32>
    %cst_110 = arith.constant 0.266011715 : f32
    %377 = vector.broadcast %cst_110 : f32 to vector<16x6xf32>
    %378 = arith.mulf %377, %376 : vector<16x6xf32>
    %379 = arith.addf %375, %378 : vector<16x6xf32>
    %380 = vector.extract_strided_slice %184 {offsets = [0, 6], sizes = [16, 6], strides = [1, 1]} : vector<16x16xf32> to vector<16x6xf32>
    %cst_111 = arith.constant 0.213005543 : f32
    %381 = vector.broadcast %cst_111 : f32 to vector<16x6xf32>
    %382 = arith.mulf %381, %380 : vector<16x6xf32>
    %383 = arith.addf %379, %382 : vector<16x6xf32>
    %384 = vector.extract_strided_slice %184 {offsets = [0, 7], sizes = [16, 6], strides = [1, 1]} : vector<16x16xf32> to vector<16x6xf32>
    %cst_112 = arith.constant 0.109360687 : f32
    %385 = vector.broadcast %cst_112 : f32 to vector<16x6xf32>
    %386 = arith.mulf %385, %384 : vector<16x6xf32>
    %387 = arith.addf %383, %386 : vector<16x6xf32>
    %388 = vector.extract_strided_slice %184 {offsets = [0, 8], sizes = [16, 6], strides = [1, 1]} : vector<16x16xf32> to vector<16x6xf32>
    %cst_113 = arith.constant 0.0360007733 : f32
    %389 = vector.broadcast %cst_113 : f32 to vector<16x6xf32>
    %390 = arith.mulf %389, %388 : vector<16x6xf32>
    %391 = arith.addf %387, %390 : vector<16x6xf32>
    %392 = vector.extract_strided_slice %184 {offsets = [0, 9], sizes = [16, 6], strides = [1, 1]} : vector<16x16xf32> to vector<16x6xf32>
    %cst_114 = arith.constant 0.00759875821 : f32
    %393 = vector.broadcast %cst_114 : f32 to vector<16x6xf32>
    %394 = arith.mulf %393, %392 : vector<16x6xf32>
    %395 = arith.addf %391, %394 : vector<16x6xf32>
    %396 = vector.extract_strided_slice %184 {offsets = [0, 10], sizes = [16, 6], strides = [1, 1]} : vector<16x16xf32> to vector<16x6xf32>
    %cst_115 = arith.constant 0.00102838012 : f32
    %397 = vector.broadcast %cst_115 : f32 to vector<16x6xf32>
    %398 = arith.mulf %397, %396 : vector<16x6xf32>
    %399 = arith.addf %395, %398 : vector<16x6xf32>
    %400 = vector.extract_strided_slice %227 {offsets = [0, 0], sizes = [16, 6], strides = [1, 1]} : vector<16x16xf32> to vector<16x6xf32>
    %cst_116 = arith.constant 0.00102838012 : f32
    %401 = vector.broadcast %cst_116 : f32 to vector<16x6xf32>
    %402 = arith.mulf %401, %400 : vector<16x6xf32>
    %403 = vector.extract_strided_slice %227 {offsets = [0, 1], sizes = [16, 6], strides = [1, 1]} : vector<16x16xf32> to vector<16x6xf32>
    %cst_117 = arith.constant 0.00759875821 : f32
    %404 = vector.broadcast %cst_117 : f32 to vector<16x6xf32>
    %405 = arith.mulf %404, %403 : vector<16x6xf32>
    %406 = arith.addf %402, %405 : vector<16x6xf32>
    %407 = vector.extract_strided_slice %227 {offsets = [0, 2], sizes = [16, 6], strides = [1, 1]} : vector<16x16xf32> to vector<16x6xf32>
    %cst_118 = arith.constant 0.0360007733 : f32
    %408 = vector.broadcast %cst_118 : f32 to vector<16x6xf32>
    %409 = arith.mulf %408, %407 : vector<16x6xf32>
    %410 = arith.addf %406, %409 : vector<16x6xf32>
    %411 = vector.extract_strided_slice %227 {offsets = [0, 3], sizes = [16, 6], strides = [1, 1]} : vector<16x16xf32> to vector<16x6xf32>
    %cst_119 = arith.constant 0.109360687 : f32
    %412 = vector.broadcast %cst_119 : f32 to vector<16x6xf32>
    %413 = arith.mulf %412, %411 : vector<16x6xf32>
    %414 = arith.addf %410, %413 : vector<16x6xf32>
    %415 = vector.extract_strided_slice %227 {offsets = [0, 4], sizes = [16, 6], strides = [1, 1]} : vector<16x16xf32> to vector<16x6xf32>
    %cst_120 = arith.constant 0.213005543 : f32
    %416 = vector.broadcast %cst_120 : f32 to vector<16x6xf32>
    %417 = arith.mulf %416, %415 : vector<16x6xf32>
    %418 = arith.addf %414, %417 : vector<16x6xf32>
    %419 = vector.extract_strided_slice %227 {offsets = [0, 5], sizes = [16, 6], strides = [1, 1]} : vector<16x16xf32> to vector<16x6xf32>
    %cst_121 = arith.constant 0.266011715 : f32
    %420 = vector.broadcast %cst_121 : f32 to vector<16x6xf32>
    %421 = arith.mulf %420, %419 : vector<16x6xf32>
    %422 = arith.addf %418, %421 : vector<16x6xf32>
    %423 = vector.extract_strided_slice %227 {offsets = [0, 6], sizes = [16, 6], strides = [1, 1]} : vector<16x16xf32> to vector<16x6xf32>
    %cst_122 = arith.constant 0.213005543 : f32
    %424 = vector.broadcast %cst_122 : f32 to vector<16x6xf32>
    %425 = arith.mulf %424, %423 : vector<16x6xf32>
    %426 = arith.addf %422, %425 : vector<16x6xf32>
    %427 = vector.extract_strided_slice %227 {offsets = [0, 7], sizes = [16, 6], strides = [1, 1]} : vector<16x16xf32> to vector<16x6xf32>
    %cst_123 = arith.constant 0.109360687 : f32
    %428 = vector.broadcast %cst_123 : f32 to vector<16x6xf32>
    %429 = arith.mulf %428, %427 : vector<16x6xf32>
    %430 = arith.addf %426, %429 : vector<16x6xf32>
    %431 = vector.extract_strided_slice %227 {offsets = [0, 8], sizes = [16, 6], strides = [1, 1]} : vector<16x16xf32> to vector<16x6xf32>
    %cst_124 = arith.constant 0.0360007733 : f32
    %432 = vector.broadcast %cst_124 : f32 to vector<16x6xf32>
    %433 = arith.mulf %432, %431 : vector<16x6xf32>
    %434 = arith.addf %430, %433 : vector<16x6xf32>
    %435 = vector.extract_strided_slice %227 {offsets = [0, 9], sizes = [16, 6], strides = [1, 1]} : vector<16x16xf32> to vector<16x6xf32>
    %cst_125 = arith.constant 0.00759875821 : f32
    %436 = vector.broadcast %cst_125 : f32 to vector<16x6xf32>
    %437 = arith.mulf %436, %435 : vector<16x6xf32>
    %438 = arith.addf %434, %437 : vector<16x6xf32>
    %439 = vector.extract_strided_slice %227 {offsets = [0, 10], sizes = [16, 6], strides = [1, 1]} : vector<16x16xf32> to vector<16x6xf32>
    %cst_126 = arith.constant 0.00102838012 : f32
    %440 = vector.broadcast %cst_126 : f32 to vector<16x6xf32>
    %441 = arith.mulf %440, %439 : vector<16x6xf32>
    %442 = arith.addf %438, %441 : vector<16x6xf32>
    %c0_127 = arith.constant 0 : index
    %443 = memref.load %arg1[%c0_127] : memref<2xf32, #tpu.memory_space<smem>>
    %c1 = arith.constant 1 : index
    %444 = memref.load %arg1[%c1] : memref<2xf32, #tpu.memory_space<smem>>
    %445 = arith.mulf %270, %270 : vector<16x6xf32>
    %446 = arith.mulf %313, %313 : vector<16x6xf32>
    %447 = arith.mulf %270, %313 : vector<16x6xf32>
    %448 = arith.subf %356, %445 : vector<16x6xf32>
    %449 = arith.subf %399, %446 : vector<16x6xf32>
    %450 = arith.subf %442, %447 : vector<16x6xf32>
    %cst_128 = arith.constant 2.000000e+00 : f32
    %451 = vector.broadcast %cst_128 : f32 to vector<16x6xf32>
    %452 = arith.mulf %451, %450 : vector<16x6xf32>
    %453 = vector.broadcast %444 : f32 to vector<16x6xf32>
    %454 = arith.addf %452, %453 : vector<16x6xf32>
    %455 = arith.addf %448, %449 : vector<16x6xf32>
    %456 = vector.broadcast %444 : f32 to vector<16x6xf32>
    %457 = arith.addf %455, %456 : vector<16x6xf32>
    %cst_129 = arith.constant 2.000000e+00 : f32
    %458 = vector.broadcast %cst_129 : f32 to vector<16x6xf32>
    %459 = arith.mulf %458, %447 : vector<16x6xf32>
    %460 = vector.broadcast %443 : f32 to vector<16x6xf32>
    %461 = arith.addf %459, %460 : vector<16x6xf32>
    %462 = arith.mulf %461, %454 : vector<16x6xf32>
    %463 = arith.addf %445, %446 : vector<16x6xf32>
    %464 = vector.broadcast %443 : f32 to vector<16x6xf32>
    %465 = arith.addf %463, %464 : vector<16x6xf32>
    %466 = arith.mulf %465, %457 : vector<16x6xf32>
    %467 = tpu.reciprocal %466 : vector<16x6xf32> -> vector<16x6xf32>
    %468 = arith.mulf %462, %467 : vector<16x6xf32>
    %469 = tpu.iota {dimensions = array<i32: 0>} : vector<16x6xi32>
    %c16_i32 = arith.constant 16 : i32
    %470 = arith.muli %arg0, %c16_i32 : i32
    %471 = vector.broadcast %470 : i32 to vector<16x6xi32>
    %472 = arith.addi %469, %471 : vector<16x6xi32>
    %c6_i32 = arith.constant 6 : i32
    %473 = vector.broadcast %c6_i32 : i32 to vector<16x6xi32>
    %474 = arith.cmpi slt, %472, %473 : vector<16x6xi32>
    %cst_130 = arith.constant 0.000000e+00 : f32
    %475 = vector.broadcast %cst_130 : f32 to vector<16x6xf32>
    %476 = arith.select %474, %468, %475 : vector<16x6xi1>, vector<16x6xf32>
    %477 = vector.shape_cast %476 : vector<16x6xf32> to vector<1x16x6xf32>
    %cst_131 = arith.constant dense<0.000000e+00> : vector<1xf32>
    %478 = vector.multi_reduction <add>, %477, %cst_131 [1, 2] : vector<1x16x6xf32> to vector<1xf32>
    %479 = vector.shape_cast %478 : vector<1xf32> to vector<1x1x1xf32>
    %480 = vector.extract %479[0, 0, 0] : f32 from vector<1x1x1xf32>
    %481 = vector.broadcast %480 : f32 to vector<1x8x128xf32>
    %c0_132 = arith.constant 0 : index
    %c0_133 = arith.constant 0 : index
    %c0_134 = arith.constant 0 : index
    %482 = vector.load %arg6[%c0_132, %c0_133, %c0_134] : memref<1x8x128xf32, #tpu.memory_space<vmem>>, vector<1x8x128xf32>
    tpu.vector_store %arg6[%c0_132, %c0_133, %c0_134], %481 {strides = array<i32>} : memref<1x8x128xf32, #tpu.memory_space<vmem>>, vector<1x8x128xf32>,
    return
  }
  func.func @transform_0(%arg0: i32) -> i32 {
    %c0_i32 = arith.constant 0 : i32
    %c0_i32_0 = arith.constant 0 : i32
    return %c0_i32 : i32
  }
  func.func @transform_1(%arg0: i32) -> (i32, i32) {
    %c0_i32 = arith.constant 0 : i32
    %c0_i32_0 = arith.constant 0 : i32
    return %arg0, %c0_i32 : i32, i32
  }
  func.func @transform_2(%arg0: i32) -> (i32, i32) {
    %c1_i32 = arith.constant 1 : i32
    %0 = arith.addi %arg0, %c1_i32 : i32
    %c1_i32_0 = arith.constant 1 : i32
    %1 = arith.muli %0, %c1_i32_0 : i32
    %c0_i32 = arith.constant 0 : i32
    %c0_i32_1 = arith.constant 0 : i32
    return %1, %c0_i32 : i32, i32
  }
  func.func @transform_3(%arg0: i32) -> (i32, i32) {
    %c0_i32 = arith.constant 0 : i32
    %c0_i32_0 = arith.constant 0 : i32
    return %arg0, %c0_i32 : i32, i32
  }
  func.func @transform_4(%arg0: i32) -> (i32, i32) {
    %c1_i32 = arith.constant 1 : i32
    %0 = arith.addi %arg0, %c1_i32 : i32
    %c1_i32_0 = arith.constant 1 : i32
    %1 = arith.muli %0, %c1_i32_0 : i32
    %c0_i32 = arith.constant 0 : i32
    %c0_i32_1 = arith.constant 0 : i32
    return %1, %c0_i32 : i32, i32
  }
  func.func @transform_5(%arg0: i32) -> (i32, i32, i32) {
    %c0_i32 = arith.constant 0 : i32
    %c0_i32_0 = arith.constant 0 : i32
    %c0_i32_1 = arith.constant 0 : i32
    return %arg0, %c0_i32, %c0_i32_0 : i32, i32, i32
  }
}

</mosaic_0001>

<llo_original>
// kernel: ssim_pallas.1
$region0: #{ssim_pallas.1}
  #allocation0 [shape = 'u32[]', space=smem, size = 0x4, offset = 0x4, fixed_abs, tag = 'smem constant byte address 0x4 - core index']
  #allocation1 [shape = 'u32[144,128]{1,0:T(1,128)}', space=vmem, size = 0x12000, scoped, tag = 'internal scratch']
  #allocation2 [shape = 'f32[26,16]{1,0:T(8,128)}', space=vmem, size = 0x4000, scoped, tag = 'scratch operand']
  #allocation3 [shape = 'f32[26,16]{1,0:T(8,128)}', space=vmem, size = 0x4000, scoped, tag = 'scratch operand']
  %s0 = inlined_call_operand.vmem [shape: f32[2], index: 0, kind: input, shape index: {}]
  %s1 = inlined_call_operand.vmem [shape: f32[32,16], index: 1, kind: input, shape index: {}, may-alias: {1,2}]
  %s2 = inlined_call_operand.vmem [shape: f32[32,16], index: 2, kind: input, shape index: {}, may-alias: {1,2}]
  %s3 = inlined_call_operand.vmem [shape: f32[32,16], index: 3, kind: input, shape index: {}, may-alias: {3,4}]
  %s4 = inlined_call_operand.vmem [shape: f32[32,16], index: 4, kind: input, shape index: {}, may-alias: {3,4}]
  %s5 = inlined_call_operand.vmem [shape: f32[1,8,128], index: 5, kind: output, shape index: {}]
  %s6 = sld [smem:[#allocation0]]
  $region34: #{ssim_pallas.1} parent=0
    _
  %s8 = ssub.s32 1, %s6
  %s9 = scalar_select 0, %s8, %s6
  $region1: #{ssim_pallas.1} parent=0
    #allocation4 [shape = 'u8[512]{0}', space=smem, size = 0x200, scoped, tag = 'input window, operand 0, single buffered']
    #allocation5 [shape = 's32[1]{0}', space=sflag, size = 0x4, scoped, tag = 'scoped memory for ssim_pallas.1']
    %10 = vsyncpa [#allocation5], 0
    // Predicated region
    $region2: #{ssim_pallas.1} parent=1 // pred_check
      _
    $region3: #{ssim_pallas.1} parent=1 // pred_check_branch
      %12 = sbr.rel (0) target = $region5
    $region4: #{ssim_pallas.1} parent=1 // pred_region
      %s14 = ssub.s32 16, 16
      %15 = vsyncadd [#allocation5], %s14
      %s17 = sshll.u32 %s0, 4
      %s18 = int_to_ptr.vmem [resolvable:$true] %s17
      %20 = dma.vmem_to_smem %s18, 16, [#allocation4], [#allocation5]
    $region5: #{ssim_pallas.1} parent=1 // pred_fallthru
      _
    // Predicated region
    $region6: #{ssim_pallas.1} parent=1 // pred_check
      _
    $region7: #{ssim_pallas.1} parent=1 // pred_check_branch
      %22 = sbr.rel (0) target = $region9
    $region8: #{ssim_pallas.1} parent=1 // pred_region
      _
    $region9: #{ssim_pallas.1} parent=1 // pred_fallthru
      _
    // Predicated region
    $region10: #{ssim_pallas.1} parent=1 // pred_check
      _
    $region11: #{ssim_pallas.1} parent=1 // pred_check_branch
      %24 = sbr.rel (0) target = $region13
    $region12: #{ssim_pallas.1} parent=1 // pred_region
      %s25 = sadd.s32 0, 1
      %s26 = smul.u32 2, %s25
      %p27 = scmp.lt.s32.totalorder %s26, 3
      %s28 = scalar_select %p27, %s26, 3
      %s29 = smul.addr %s28, 8
      %s30 = scalar_lea.vmem %s2, %s29
      %s31 = sadd.s32 0, 1
      %s32 = smul.u32 2, %s31
    $region13: #{ssim_pallas.1} parent=1 // pred_fallthru
      _
    // Predicated region
    $region14: #{ssim_pallas.1} parent=1 // pred_check
      _
    $region15: #{ssim_pallas.1} parent=1 // pred_check_branch
      %34 = sbr.rel (0) target = $region17
    $region16: #{ssim_pallas.1} parent=1 // pred_region
      _
    $region17: #{ssim_pallas.1} parent=1 // pred_fallthru
      _
    // Predicated region
    $region18: #{ssim_pallas.1} parent=1 // pred_check
      _
    $region19: #{ssim_pallas.1} parent=1 // pred_check_branch
      %36 = sbr.rel (0) target = $region21
    $region20: #{ssim_pallas.1} parent=1 // pred_region
      %s37 = sadd.s32 0, 1
      %s38 = smul.u32 2, %s37
      %p39 = scmp.lt.s32.totalorder %s38, 3
      %s40 = scalar_select %p39, %s38, 3
      %s41 = smul.addr %s40, 8
      %s42 = scalar_lea.vmem %s4, %s41
      %s43 = sadd.s32 0, 1
      %s44 = smul.u32 2, %s43
    $region21: #{ssim_pallas.1} parent=1 // pred_fallthru
      _
    // Predicated region
    $region22: #{ssim_pallas.1} parent=1 // pred_check
      _
    $region23: #{ssim_pallas.1} parent=1 // pred_check_branch
      %46 = sbr.rel (0) target = $region25
    $region24: #{ssim_pallas.1} parent=1 // pred_region
      %47 = dma.done [#allocation5], 16
    $region25: #{ssim_pallas.1} parent=1 // pred_fallthru
      _
    %48 = sfence
    %s49 = sadd.s32 0, 1
    %s50 = smul.u32 2, %s49
    %p51 = scmp.lt.s32.totalorder %s50, 3
    %s52 = scalar_select %p51, %s50, 3
    %s53 = smul.addr %s52, 8
    %s54 = scalar_lea.vmem %s2, %s53
    %s55 = sadd.s32 0, 1
    %s56 = smul.u32 2, %s55
    %p57 = scmp.lt.s32.totalorder %s56, 3
    %s58 = scalar_select %p57, %s56, 3
    %s59 = smul.addr %s58, 8
    %s60 = scalar_lea.vmem %s4, %s59
    %s61 = sadd.s32 0, 1
    %s62 = smul.u32 2, %s61
    %p63 = scmp.lt.s32.totalorder %s62, 3
    %s64 = scalar_select %p63, %s62, 3
    %s65 = smul.addr %s64, 8
    %s66 = scalar_lea.vmem %s2, %s65
    %s67 = sadd.s32 0, 1
    %s68 = smul.u32 2, %s67
    %s69 = sadd.s32 0, 1
    %s70 = smul.u32 2, %s69
    %p71 = scmp.lt.s32.totalorder %s70, 3
    %s72 = scalar_select %p71, %s70, 3
    %s73 = smul.addr %s72, 8
    %s74 = scalar_lea.vmem %s4, %s73
    %s75 = sadd.s32 0, 1
    %s76 = smul.u32 2, %s75
    %v77 = vld [vmem:[%s1] sm:$0xff]
    %v78 = vld [vmem:[%s1 + $0x8] sm:$0xff]
    %vm79 = vcmask 130048
    %80 = vst.msk [vmem:[#allocation2] sm:$0xff] %vm79, %v77
    %81 = vst.msk [vmem:[#allocation2 + $0x8] sm:$0xff] %vm79, %v78
    %v82 = vld [vmem:[%s66] sm:$0xff]
    %v83 = vld [vmem:[%s66 + $0x8] sm:$0x3]
    %84 = vst.msk [vmem:[#allocation2 + $0x10] sm:$0xff] %vm79, %v82
    %vm85 = vcmask 123904
    %86 = vst.msk [vmem:[#allocation2 + $0x18] sm:$0x3] %vm85, %v83
    %v87 = vld [vmem:[%s3] sm:$0xff]
    %v88 = vld [vmem:[%s3 + $0x8] sm:$0xff]
    %89 = vst.msk [vmem:[#allocation3] sm:$0xff] %vm79, %v87
    %90 = vst.msk [vmem:[#allocation3 + $0x8] sm:$0xff] %vm79, %v88
    %v91 = vld [vmem:[%s74] sm:$0xff]
    %v92 = vld [vmem:[%s74 + $0x8] sm:$0x3]
    %93 = vst.msk [vmem:[#allocation3 + $0x10] sm:$0xff] %vm79, %v91
    %94 = vst.msk [vmem:[#allocation3 + $0x18] sm:$0x3] %vm85, %v92
    %v95 = vld [vmem:[#allocation2] sm:$0xff]
    %v96 = vld [vmem:[#allocation2 + $0x8] sm:$0xff]
    %v97 = vld [vmem:[#allocation2 + $0x10] sm:$0xff]
    %v98 = vld [vmem:[#allocation2 + $0x18] sm:$0x3]
    %v99 = vld [vmem:[#allocation3] sm:$0xff]
    %v100 = vld [vmem:[#allocation3 + $0x8] sm:$0xff]
    %v101 = vld [vmem:[#allocation3 + $0x10] sm:$0xff]
    %v102 = vld [vmem:[#allocation3 + $0x18] sm:$0x3]
    %v103 = vmul.f32 %v95, %v95
    %v104 = vmul.f32 %v96, %v96
    %v105 = vmul.f32 %v97, %v97
    %v106 = vmul.f32 %v98, %v98
    %v107 = vmul.f32 %v99, %v99
    %v108 = vmul.f32 %v100, %v100
    %v109 = vmul.f32 %v101, %v101
    %v110 = vmul.f32 %v102, %v102
    %v111 = vmul.f32 %v95, %v99
    %v112 = vmul.f32 %v96, %v100
    %v113 = vmul.f32 %v97, %v101
    %v114 = vmul.f32 %v98, %v102
    %v115 = vmul.f32 %v95, 0.0010283801
    %v116 = vmul.f32 %v96, 0.0010283801
    %v117 = vmul.f32 %v95, 0.007598758
    %v118 = vmul.f32 %v96, 0.007598758
    %v119 = vmul.f32 %v97, 0.007598758
    %vm123 = vcmask 1046528
    %v124 = vrot.slane %v117, 1
    %v125 = vrot.slane %v118, 1
    %v126 = vsel %vm123, %v124, %v125
    %v127 = vrot.slane %v119, 1
    %v128 = vsel %vm123, %v125, %v127
    %v131 = vadd.f32 %v115, %v126
    %v132 = vadd.f32 %v116, %v128
    %v133 = vmul.f32 %v95, 0.036000773
    %v134 = vmul.f32 %v96, 0.036000773
    %v135 = vmul.f32 %v97, 0.036000773
    %vm139 = vcmask 1045504
    %v140 = vrot.slane %v133, 2
    %v141 = vrot.slane %v134, 2
    %v142 = vsel %vm139, %v140, %v141
    %v143 = vrot.slane %v135, 2
    %v144 = vsel %vm139, %v141, %v143
    %v147 = vadd.f32 %v131, %v142
    %v148 = vadd.f32 %v132, %v144
    %v149 = vmul.f32 %v95, 0.10936069
    %v150 = vmul.f32 %v96, 0.10936069
    %v151 = vmul.f32 %v97, 0.10936069
    %vm155 = vcmask 1044480
    %v156 = vrot.slane %v149, 3
    %v157 = vrot.slane %v150, 3
    %v158 = vsel %vm155, %v156, %v157
    %v159 = vrot.slane %v151, 3
    %v160 = vsel %vm155, %v157, %v159
    %v163 = vadd.f32 %v147, %v158
    %v164 = vadd.f32 %v148, %v160
    %v165 = vmul.f32 %v95, 0.21300554
    %v166 = vmul.f32 %v96, 0.21300554
    %v167 = vmul.f32 %v97, 0.21300554
    %vm171 = vcmask 1043456
    %v172 = vrot.slane %v165, 4
    %v173 = vrot.slane %v166, 4
    %v174 = vsel %vm171, %v172, %v173
    %v175 = vrot.slane %v167, 4
    %v176 = vsel %vm171, %v173, %v175
    %v179 = vadd.f32 %v163, %v174
    %v180 = vadd.f32 %v164, %v176
    %v181 = vmul.f32 %v95, 0.26601171
    %v182 = vmul.f32 %v96, 0.26601171
    %v183 = vmul.f32 %v97, 0.26601171
    %vm187 = vcmask 1042432
    %v188 = vrot.slane %v181, 5
    %v189 = vrot.slane %v182, 5
    %v190 = vsel %vm187, %v188, %v189
    %v191 = vrot.slane %v183, 5
    %v192 = vsel %vm187, %v189, %v191
    %v195 = vadd.f32 %v179, %v190
    %v196 = vadd.f32 %v180, %v192
    %vm197 = vcmask 1041408
    %v198 = vrot.slane %v165, 6
    %v199 = vrot.slane %v166, 6
    %v200 = vsel %vm197, %v198, %v199
    %v201 = vrot.slane %v167, 6
    %v202 = vsel %vm197, %v199, %v201
    %v205 = vadd.f32 %v195, %v200
    %v206 = vadd.f32 %v196, %v202
    %vm207 = vcmask 1040384
    %v208 = vrot.slane %v149, 7
    %v209 = vrot.slane %v150, 7
    %v210 = vsel %vm207, %v208, %v209
    %v211 = vrot.slane %v151, 7
    %v212 = vsel %vm207, %v209, %v211
    %v215 = vadd.f32 %v205, %v210
    %v216 = vadd.f32 %v206, %v212
    %v217 = vadd.f32 %v215, %v134
    %v218 = vadd.f32 %v216, %v135
    %v219 = vmul.f32 %v98, 0.007598758
    %v221 = vrot.slane %v219, 1
    %v222 = vsel %vm123, %v127, %v221
    %v224 = vadd.f32 %v217, %v128
    %v225 = vadd.f32 %v218, %v222
    %v226 = vmul.f32 %v97, 0.0010283801
    %v227 = vmul.f32 %v98, 0.0010283801
    %v231 = vrot.slane %v116, 2
    %v232 = vrot.slane %v226, 2
    %v233 = vsel %vm139, %v231, %v232
    %v234 = vrot.slane %v227, 2
    %v235 = vsel %vm139, %v232, %v234
    %v238 = vadd.f32 %v224, %v233
    %v239 = vadd.f32 %v225, %v235
    %v240 = vmul.f32 %v99, 0.0010283801
    %v241 = vmul.f32 %v100, 0.0010283801
    %v242 = vmul.f32 %v99, 0.007598758
    %v243 = vmul.f32 %v100, 0.007598758
    %v244 = vmul.f32 %v101, 0.007598758
    %v248 = vrot.slane %v242, 1
    %v249 = vrot.slane %v243, 1
    %v250 = vsel %vm123, %v248, %v249
    %v251 = vrot.slane %v244, 1
    %v252 = vsel %vm123, %v249, %v251
    %v255 = vadd.f32 %v240, %v250
    %v256 = vadd.f32 %v241, %v252
    %v257 = vmul.f32 %v99, 0.036000773
    %v258 = vmul.f32 %v100, 0.036000773
    %v259 = vmul.f32 %v101, 0.036000773
    %v263 = vrot.slane %v257, 2
    %v264 = vrot.slane %v258, 2
    %v265 = vsel %vm139, %v263, %v264
    %v266 = vrot.slane %v259, 2
    %v267 = vsel %vm139, %v264, %v266
    %v270 = vadd.f32 %v255, %v265
    %v271 = vadd.f32 %v256, %v267
    %v272 = vmul.f32 %v99, 0.10936069
    %v273 = vmul.f32 %v100, 0.10936069
    %v274 = vmul.f32 %v101, 0.10936069
    %v278 = vrot.slane %v272, 3
    %v279 = vrot.slane %v273, 3
    %v280 = vsel %vm155, %v278, %v279
    %v281 = vrot.slane %v274, 3
    %v282 = vsel %vm155, %v279, %v281
    %v285 = vadd.f32 %v270, %v280
    %v286 = vadd.f32 %v271, %v282
    %v287 = vmul.f32 %v99, 0.21300554
    %v288 = vmul.f32 %v100, 0.21300554
    %v289 = vmul.f32 %v101, 0.21300554
    %v293 = vrot.slane %v287, 4
    %v294 = vrot.slane %v288, 4
    %v295 = vsel %vm171, %v293, %v294
    %v296 = vrot.slane %v289, 4
    %v297 = vsel %vm171, %v294, %v296
    %v300 = vadd.f32 %v285, %v295
    %v301 = vadd.f32 %v286, %v297
    %v302 = vmul.f32 %v99, 0.26601171
    %v303 = vmul.f32 %v100, 0.26601171
    %v304 = vmul.f32 %v101, 0.26601171
    %v308 = vrot.slane %v302, 5
    %v309 = vrot.slane %v303, 5
    %v310 = vsel %vm187, %v308, %v309
    %v311 = vrot.slane %v304, 5
    %v312 = vsel %vm187, %v309, %v311
    %v315 = vadd.f32 %v300, %v310
    %v316 = vadd.f32 %v301, %v312
    %v317 = vrot.slane %v287, 6
    %v318 = vrot.slane %v288, 6
    %v319 = vsel %vm197, %v317, %v318
    %v320 = vrot.slane %v289, 6
    %v321 = vsel %vm197, %v318, %v320
    %v324 = vadd.f32 %v315, %v319
    %v325 = vadd.f32 %v316, %v321
    %v326 = vrot.slane %v272, 7
    %v327 = vrot.slane %v273, 7
    %v328 = vsel %vm207, %v326, %v327
    %v329 = vrot.slane %v274, 7
    %v330 = vsel %vm207, %v327, %v329
    %v333 = vadd.f32 %v324, %v328
    %v334 = vadd.f32 %v325, %v330
    %v335 = vadd.f32 %v333, %v258
    %v336 = vadd.f32 %v334, %v259
    %v337 = vmul.f32 %v102, 0.007598758
    %v339 = vrot.slane %v337, 1
    %v340 = vsel %vm123, %v251, %v339
    %v342 = vadd.f32 %v335, %v252
    %v343 = vadd.f32 %v336, %v340
    %v344 = vmul.f32 %v101, 0.0010283801
    %v345 = vmul.f32 %v102, 0.0010283801
    %v349 = vrot.slane %v241, 2
    %v350 = vrot.slane %v344, 2
    %v351 = vsel %vm139, %v349, %v350
    %v352 = vrot.slane %v345, 2
    %v353 = vsel %vm139, %v350, %v352
    %v356 = vadd.f32 %v342, %v351
    %v357 = vadd.f32 %v343, %v353
    %v358 = vmul.f32 %v103, 0.0010283801
    %v359 = vmul.f32 %v104, 0.0010283801
    %v360 = vmul.f32 %v103, 0.007598758
    %v361 = vmul.f32 %v104, 0.007598758
    %v362 = vmul.f32 %v105, 0.007598758
    %v366 = vrot.slane %v360, 1
    %v367 = vrot.slane %v361, 1
    %v368 = vsel %vm123, %v366, %v367
    %v369 = vrot.slane %v362, 1
    %v370 = vsel %vm123, %v367, %v369
    %v373 = vadd.f32 %v358, %v368
    %v374 = vadd.f32 %v359, %v370
    %v375 = vmul.f32 %v103, 0.036000773
    %v376 = vmul.f32 %v104, 0.036000773
    %v377 = vmul.f32 %v105, 0.036000773
    %v381 = vrot.slane %v375, 2
    %v382 = vrot.slane %v376, 2
    %v383 = vsel %vm139, %v381, %v382
    %v384 = vrot.slane %v377, 2
    %v385 = vsel %vm139, %v382, %v384
    %v388 = vadd.f32 %v373, %v383
    %v389 = vadd.f32 %v374, %v385
    %v390 = vmul.f32 %v103, 0.10936069
    %v391 = vmul.f32 %v104, 0.10936069
    %v392 = vmul.f32 %v105, 0.10936069
    %v396 = vrot.slane %v390, 3
    %v397 = vrot.slane %v391, 3
    %v398 = vsel %vm155, %v396, %v397
    %v399 = vrot.slane %v392, 3
    %v400 = vsel %vm155, %v397, %v399
    %v403 = vadd.f32 %v388, %v398
    %v404 = vadd.f32 %v389, %v400
    %v405 = vmul.f32 %v103, 0.21300554
    %v406 = vmul.f32 %v104, 0.21300554
    %v407 = vmul.f32 %v105, 0.21300554
    %v411 = vrot.slane %v405, 4
    %v412 = vrot.slane %v406, 4
    %v413 = vsel %vm171, %v411, %v412
    %v414 = vrot.slane %v407, 4
    %v415 = vsel %vm171, %v412, %v414
    %v418 = vadd.f32 %v403, %v413
    %v419 = vadd.f32 %v404, %v415
    %v420 = vmul.f32 %v103, 0.26601171
    %v421 = vmul.f32 %v104, 0.26601171
    %v422 = vmul.f32 %v105, 0.26601171
    %v426 = vrot.slane %v420, 5
    %v427 = vrot.slane %v421, 5
    %v428 = vsel %vm187, %v426, %v427
    %v429 = vrot.slane %v422, 5
    %v430 = vsel %vm187, %v427, %v429
    %v433 = vadd.f32 %v418, %v428
    %v434 = vadd.f32 %v419, %v430
    %v435 = vrot.slane %v405, 6
    %v436 = vrot.slane %v406, 6
    %v437 = vsel %vm197, %v435, %v436
    %v438 = vrot.slane %v407, 6
    %v439 = vsel %vm197, %v436, %v438
    %v442 = vadd.f32 %v433, %v437
    %v443 = vadd.f32 %v434, %v439
    %v444 = vrot.slane %v390, 7
    %v445 = vrot.slane %v391, 7
    %v446 = vsel %vm207, %v444, %v445
    %v447 = vrot.slane %v392, 7
    %v448 = vsel %vm207, %v445, %v447
    %v451 = vadd.f32 %v442, %v446
    %v452 = vadd.f32 %v443, %v448
    %v453 = vadd.f32 %v451, %v376
    %v454 = vadd.f32 %v452, %v377
    %v455 = vmul.f32 %v106, 0.007598758
    %v457 = vrot.slane %v455, 1
    %v458 = vsel %vm123, %v369, %v457
    %v460 = vadd.f32 %v453, %v370
    %v461 = vadd.f32 %v454, %v458
    %v462 = vmul.f32 %v105, 0.0010283801
    %v463 = vmul.f32 %v106, 0.0010283801
    %v467 = vrot.slane %v359, 2
    %v468 = vrot.slane %v462, 2
    %v469 = vsel %vm139, %v467, %v468
    %v470 = vrot.slane %v463, 2
    %v471 = vsel %vm139, %v468, %v470
    %v474 = vadd.f32 %v460, %v469
    %v475 = vadd.f32 %v461, %v471
    %v476 = vmul.f32 %v107, 0.0010283801
    %v477 = vmul.f32 %v108, 0.0010283801
    %v478 = vmul.f32 %v107, 0.007598758
    %v479 = vmul.f32 %v108, 0.007598758
    %v480 = vmul.f32 %v109, 0.007598758
    %v484 = vrot.slane %v478, 1
    %v485 = vrot.slane %v479, 1
    %v486 = vsel %vm123, %v484, %v485
    %v487 = vrot.slane %v480, 1
    %v488 = vsel %vm123, %v485, %v487
    %v491 = vadd.f32 %v476, %v486
    %v492 = vadd.f32 %v477, %v488
    %v493 = vmul.f32 %v107, 0.036000773
    %v494 = vmul.f32 %v108, 0.036000773
    %v495 = vmul.f32 %v109, 0.036000773
    %v499 = vrot.slane %v493, 2
    %v500 = vrot.slane %v494, 2
    %v501 = vsel %vm139, %v499, %v500
    %v502 = vrot.slane %v495, 2
    %v503 = vsel %vm139, %v500, %v502
    %v506 = vadd.f32 %v491, %v501
    %v507 = vadd.f32 %v492, %v503
    %v508 = vmul.f32 %v107, 0.10936069
    %v509 = vmul.f32 %v108, 0.10936069
    %v510 = vmul.f32 %v109, 0.10936069
    %v514 = vrot.slane %v508, 3
    %v515 = vrot.slane %v509, 3
    %v516 = vsel %vm155, %v514, %v515
    %v517 = vrot.slane %v510, 3
    %v518 = vsel %vm155, %v515, %v517
    %v521 = vadd.f32 %v506, %v516
    %v522 = vadd.f32 %v507, %v518
    %v523 = vmul.f32 %v107, 0.21300554
    %v524 = vmul.f32 %v108, 0.21300554
    %v525 = vmul.f32 %v109, 0.21300554
    %v529 = vrot.slane %v523, 4
    %v530 = vrot.slane %v524, 4
    %v531 = vsel %vm171, %v529, %v530
    %v532 = vrot.slane %v525, 4
    %v533 = vsel %vm171, %v530, %v532
    %v536 = vadd.f32 %v521, %v531
    %v537 = vadd.f32 %v522, %v533
    %v538 = vmul.f32 %v107, 0.26601171
    %v539 = vmul.f32 %v108, 0.26601171
    %v540 = vmul.f32 %v109, 0.26601171
    %v544 = vrot.slane %v538, 5
    %v545 = vrot.slane %v539, 5
    %v546 = vsel %vm187, %v544, %v545
    %v547 = vrot.slane %v540, 5
    %v548 = vsel %vm187, %v545, %v547
    %v551 = vadd.f32 %v536, %v546
    %v552 = vadd.f32 %v537, %v548
    %v553 = vrot.slane %v523, 6
    %v554 = vrot.slane %v524, 6
    %v555 = vsel %vm197, %v553, %v554
    %v556 = vrot.slane %v525, 6
    %v557 = vsel %vm197, %v554, %v556
    %v560 = vadd.f32 %v551, %v555
    %v561 = vadd.f32 %v552, %v557
    %v562 = vrot.slane %v508, 7
    %v563 = vrot.slane %v509, 7
    %v564 = vsel %vm207, %v562, %v563
    %v565 = vrot.slane %v510, 7
    %v566 = vsel %vm207, %v563, %v565
    %v569 = vadd.f32 %v560, %v564
    %v570 = vadd.f32 %v561, %v566
    %v571 = vadd.f32 %v569, %v494
    %v572 = vadd.f32 %v570, %v495
    %v573 = vmul.f32 %v110, 0.007598758
    %v575 = vrot.slane %v573, 1
    %v576 = vsel %vm123, %v487, %v575
    %v578 = vadd.f32 %v571, %v488
    %v579 = vadd.f32 %v572, %v576
    %v580 = vmul.f32 %v109, 0.0010283801
    %v581 = vmul.f32 %v110, 0.0010283801
    %v585 = vrot.slane %v477, 2
    %v586 = vrot.slane %v580, 2
    %v587 = vsel %vm139, %v585, %v586
    %v588 = vrot.slane %v581, 2
    %v589 = vsel %vm139, %v586, %v588
    %v592 = vadd.f32 %v578, %v587
    %v593 = vadd.f32 %v579, %v589
    %v594 = vmul.f32 %v111, 0.0010283801
    %v595 = vmul.f32 %v112, 0.0010283801
    %v596 = vmul.f32 %v111, 0.007598758
    %v597 = vmul.f32 %v112, 0.007598758
    %v598 = vmul.f32 %v113, 0.007598758
    %v602 = vrot.slane %v596, 1
    %v603 = vrot.slane %v597, 1
    %v604 = vsel %vm123, %v602, %v603
    %v605 = vrot.slane %v598, 1
    %v606 = vsel %vm123, %v603, %v605
    %v609 = vadd.f32 %v594, %v604
    %v610 = vadd.f32 %v595, %v606
    %v611 = vmul.f32 %v111, 0.036000773
    %v612 = vmul.f32 %v112, 0.036000773
    %v613 = vmul.f32 %v113, 0.036000773
    %v617 = vrot.slane %v611, 2
    %v618 = vrot.slane %v612, 2
    %v619 = vsel %vm139, %v617, %v618
    %v620 = vrot.slane %v613, 2
    %v621 = vsel %vm139, %v618, %v620
    %v624 = vadd.f32 %v609, %v619
    %v625 = vadd.f32 %v610, %v621
    %v626 = vmul.f32 %v111, 0.10936069
    %v627 = vmul.f32 %v112, 0.10936069
    %v628 = vmul.f32 %v113, 0.10936069
    %v632 = vrot.slane %v626, 3
    %v633 = vrot.slane %v627, 3
    %v634 = vsel %vm155, %v632, %v633
    %v635 = vrot.slane %v628, 3
    %v636 = vsel %vm155, %v633, %v635
    %v639 = vadd.f32 %v624, %v634
    %v640 = vadd.f32 %v625, %v636
    %v641 = vmul.f32 %v111, 0.21300554
    %v642 = vmul.f32 %v112, 0.21300554
    %v643 = vmul.f32 %v113, 0.21300554
    %v647 = vrot.slane %v641, 4
    %v648 = vrot.slane %v642, 4
    %v649 = vsel %vm171, %v647, %v648
    %v650 = vrot.slane %v643, 4
    %v651 = vsel %vm171, %v648, %v650
    %v654 = vadd.f32 %v639, %v649
    %v655 = vadd.f32 %v640, %v651
    %v656 = vmul.f32 %v111, 0.26601171
    %v657 = vmul.f32 %v112, 0.26601171
    %v658 = vmul.f32 %v113, 0.26601171
    %v662 = vrot.slane %v656, 5
    %v663 = vrot.slane %v657, 5
    %v664 = vsel %vm187, %v662, %v663
    %v665 = vrot.slane %v658, 5
    %v666 = vsel %vm187, %v663, %v665
    %v669 = vadd.f32 %v654, %v664
    %v670 = vadd.f32 %v655, %v666
    %v671 = vrot.slane %v641, 6
    %v672 = vrot.slane %v642, 6
    %v673 = vsel %vm197, %v671, %v672
    %v674 = vrot.slane %v643, 6
    %v675 = vsel %vm197, %v672, %v674
    %v678 = vadd.f32 %v669, %v673
    %v679 = vadd.f32 %v670, %v675
    %v680 = vrot.slane %v626, 7
    %v681 = vrot.slane %v627, 7
    %v682 = vsel %vm207, %v680, %v681
    %v683 = vrot.slane %v628, 7
    %v684 = vsel %vm207, %v681, %v683
    %v687 = vadd.f32 %v678, %v682
    %v688 = vadd.f32 %v679, %v684
    %v689 = vadd.f32 %v687, %v612
    %v690 = vadd.f32 %v688, %v613
    %v691 = vmul.f32 %v114, 0.007598758
    %v693 = vrot.slane %v691, 1
    %v694 = vsel %vm123, %v605, %v693
    %v696 = vadd.f32 %v689, %v606
    %v697 = vadd.f32 %v690, %v694
    %v698 = vmul.f32 %v113, 0.0010283801
    %v699 = vmul.f32 %v114, 0.0010283801
    %v703 = vrot.slane %v595, 2
    %v704 = vrot.slane %v698, 2
    %v705 = vsel %vm139, %v703, %v704
    %v706 = vrot.slane %v699, 2
    %v707 = vsel %vm139, %v704, %v706
    %v710 = vadd.f32 %v696, %v705
    %v711 = vadd.f32 %v697, %v707
    %v712 = vmul.f32 %v238, 0.0010283801
    %v713 = vmul.f32 %v239, 0.0010283801
    %v714 = vmul.f32 %v238, 0.007598758
    %v715 = vmul.f32 %v239, 0.007598758
    %718 = vrot.lane.b32.xlu0 %v714, 127
    %v719 = vpop.permute.xlu0 %718
    %720 = vrot.lane.b32.xlu0 %v715, 127
    %v721 = vpop.permute.xlu0 %720
    %v724 = vadd.f32 %v712, %v719
    %v725 = vadd.f32 %v713, %v721
    %v726 = vmul.f32 %v238, 0.036000773
    %v727 = vmul.f32 %v239, 0.036000773
    %730 = vrot.lane.b32.xlu0 %v726, 126
    %v731 = vpop.permute.xlu0 %730
    %732 = vrot.lane.b32.xlu0 %v727, 126
    %v733 = vpop.permute.xlu0 %732
    %v736 = vadd.f32 %v724, %v731
    %v737 = vadd.f32 %v725, %v733
    %v738 = vmul.f32 %v238, 0.10936069
    %v739 = vmul.f32 %v239, 0.10936069
    %742 = vrot.lane.b32.xlu0 %v738, 125
    %v743 = vpop.permute.xlu0 %742
    %744 = vrot.lane.b32.xlu0 %v739, 125
    %v745 = vpop.permute.xlu0 %744
    %v748 = vadd.f32 %v736, %v743
    %v749 = vadd.f32 %v737, %v745
    %v750 = vmul.f32 %v238, 0.21300554
    %v751 = vmul.f32 %v239, 0.21300554
    %754 = vrot.lane.b32.xlu0 %v750, 124
    %v755 = vpop.permute.xlu0 %754
    %756 = vrot.lane.b32.xlu0 %v751, 124
    %v757 = vpop.permute.xlu0 %756
    %v760 = vadd.f32 %v748, %v755
    %v761 = vadd.f32 %v749, %v757
    %v762 = vmul.f32 %v238, 0.26601171
    %v763 = vmul.f32 %v239, 0.26601171
    %766 = vrot.lane.b32.xlu0 %v762, 123
    %v767 = vpop.permute.xlu0 %766
    %768 = vrot.lane.b32.xlu0 %v763, 123
    %v769 = vpop.permute.xlu0 %768
    %v772 = vadd.f32 %v760, %v767
    %v773 = vadd.f32 %v761, %v769
    %774 = vrot.lane.b32.xlu0 %v750, 122
    %v775 = vpop.permute.xlu0 %774
    %776 = vrot.lane.b32.xlu0 %v751, 122
    %v777 = vpop.permute.xlu0 %776
    %v780 = vadd.f32 %v772, %v775
    %v781 = vadd.f32 %v773, %v777
    %782 = vrot.lane.b32.xlu0 %v738, 121
    %v783 = vpop.permute.xlu0 %782
    %784 = vrot.lane.b32.xlu0 %v739, 121
    %v785 = vpop.permute.xlu0 %784
    %v788 = vadd.f32 %v780, %v783
    %v789 = vadd.f32 %v781, %v785
    %790 = vrot.lane.b32.xlu0 %v726, 120
    %v791 = vpop.permute.xlu0 %790
    %792 = vrot.lane.b32.xlu0 %v727, 120
    %v793 = vpop.permute.xlu0 %792
    %v796 = vadd.f32 %v788, %v791
    %v797 = vadd.f32 %v789, %v793
    %798 = vrot.lane.b32.xlu0 %v714, 119
    %v799 = vpop.permute.xlu0 %798
    %800 = vrot.lane.b32.xlu0 %v715, 119
    %v801 = vpop.permute.xlu0 %800
    %v804 = vadd.f32 %v796, %v799
    %v805 = vadd.f32 %v797, %v801
    %808 = vrot.lane.b32.xlu0 %v712, 118
    %v809 = vpop.permute.xlu0 %808
    %810 = vrot.lane.b32.xlu0 %v713, 118
    %v811 = vpop.permute.xlu0 %810
    %v814 = vadd.f32 %v804, %v809
    %v815 = vadd.f32 %v805, %v811
    %v816 = vmul.f32 %v356, 0.0010283801
    %v817 = vmul.f32 %v357, 0.0010283801
    %v818 = vmul.f32 %v356, 0.007598758
    %v819 = vmul.f32 %v357, 0.007598758
    %822 = vrot.lane.b32.xlu0 %v818, 127
    %v823 = vpop.permute.xlu0 %822
    %824 = vrot.lane.b32.xlu0 %v819, 127
    %v825 = vpop.permute.xlu0 %824
    %v828 = vadd.f32 %v816, %v823
    %v829 = vadd.f32 %v817, %v825
    %v830 = vmul.f32 %v356, 0.036000773
    %v831 = vmul.f32 %v357, 0.036000773
    %834 = vrot.lane.b32.xlu0 %v830, 126
    %v835 = vpop.permute.xlu0 %834
    %836 = vrot.lane.b32.xlu0 %v831, 126
    %v837 = vpop.permute.xlu0 %836
    %v840 = vadd.f32 %v828, %v835
    %v841 = vadd.f32 %v829, %v837
    %v842 = vmul.f32 %v356, 0.10936069
    %v843 = vmul.f32 %v357, 0.10936069
    %846 = vrot.lane.b32.xlu0 %v842, 125
    %v847 = vpop.permute.xlu0 %846
    %848 = vrot.lane.b32.xlu0 %v843, 125
    %v849 = vpop.permute.xlu0 %848
    %v852 = vadd.f32 %v840, %v847
    %v853 = vadd.f32 %v841, %v849
    %v854 = vmul.f32 %v356, 0.21300554
    %v855 = vmul.f32 %v357, 0.21300554
    %858 = vrot.lane.b32.xlu0 %v854, 124
    %v859 = vpop.permute.xlu0 %858
    %860 = vrot.lane.b32.xlu0 %v855, 124
    %v861 = vpop.permute.xlu0 %860
    %v864 = vadd.f32 %v852, %v859
    %v865 = vadd.f32 %v853, %v861
    %v866 = vmul.f32 %v356, 0.26601171
    %v867 = vmul.f32 %v357, 0.26601171
    %870 = vrot.lane.b32.xlu0 %v866, 123
    %v871 = vpop.permute.xlu0 %870
    %872 = vrot.lane.b32.xlu0 %v867, 123
    %v873 = vpop.permute.xlu0 %872
    %v876 = vadd.f32 %v864, %v871
    %v877 = vadd.f32 %v865, %v873
    %878 = vrot.lane.b32.xlu0 %v854, 122
    %v879 = vpop.permute.xlu0 %878
    %880 = vrot.lane.b32.xlu0 %v855, 122
    %v881 = vpop.permute.xlu0 %880
    %v884 = vadd.f32 %v876, %v879
    %v885 = vadd.f32 %v877, %v881
    %886 = vrot.lane.b32.xlu0 %v842, 121
    %v887 = vpop.permute.xlu0 %886
    %888 = vrot.lane.b32.xlu0 %v843, 121
    %v889 = vpop.permute.xlu0 %888
    %v892 = vadd.f32 %v884, %v887
    %v893 = vadd.f32 %v885, %v889
    %894 = vrot.lane.b32.xlu0 %v830, 120
    %v895 = vpop.permute.xlu0 %894
    %896 = vrot.lane.b32.xlu0 %v831, 120
    %v897 = vpop.permute.xlu0 %896
    %v900 = vadd.f32 %v892, %v895
    %v901 = vadd.f32 %v893, %v897
    %902 = vrot.lane.b32.xlu0 %v818, 119
    %v903 = vpop.permute.xlu0 %902
    %904 = vrot.lane.b32.xlu0 %v819, 119
    %v905 = vpop.permute.xlu0 %904
    %v908 = vadd.f32 %v900, %v903
    %v909 = vadd.f32 %v901, %v905
    %912 = vrot.lane.b32.xlu0 %v816, 118
    %v913 = vpop.permute.xlu0 %912
    %914 = vrot.lane.b32.xlu0 %v817, 118
    %v915 = vpop.permute.xlu0 %914
    %v918 = vadd.f32 %v908, %v913
    %v919 = vadd.f32 %v909, %v915
    %v920 = vmul.f32 %v474, 0.0010283801
    %v921 = vmul.f32 %v475, 0.0010283801
    %v922 = vmul.f32 %v474, 0.007598758
    %v923 = vmul.f32 %v475, 0.007598758
    %926 = vrot.lane.b32.xlu0 %v922, 127
    %v927 = vpop.permute.xlu0 %926
    %928 = vrot.lane.b32.xlu0 %v923, 127
    %v929 = vpop.permute.xlu0 %928
    %v932 = vadd.f32 %v920, %v927
    %v933 = vadd.f32 %v921, %v929
    %v934 = vmul.f32 %v474, 0.036000773
    %v935 = vmul.f32 %v475, 0.036000773
    %938 = vrot.lane.b32.xlu0 %v934, 126
    %v939 = vpop.permute.xlu0 %938
    %940 = vrot.lane.b32.xlu0 %v935, 126
    %v941 = vpop.permute.xlu0 %940
    %v944 = vadd.f32 %v932, %v939
    %v945 = vadd.f32 %v933, %v941
    %v946 = vmul.f32 %v474, 0.10936069
    %v947 = vmul.f32 %v475, 0.10936069
    %950 = vrot.lane.b32.xlu0 %v946, 125
    %v951 = vpop.permute.xlu0 %950
    %952 = vrot.lane.b32.xlu0 %v947, 125
    %v953 = vpop.permute.xlu0 %952
    %v956 = vadd.f32 %v944, %v951
    %v957 = vadd.f32 %v945, %v953
    %v958 = vmul.f32 %v474, 0.21300554
    %v959 = vmul.f32 %v475, 0.21300554
    %962 = vrot.lane.b32.xlu0 %v958, 124
    %v963 = vpop.permute.xlu0 %962
    %964 = vrot.lane.b32.xlu0 %v959, 124
    %v965 = vpop.permute.xlu0 %964
    %v968 = vadd.f32 %v956, %v963
    %v969 = vadd.f32 %v957, %v965
    %v970 = vmul.f32 %v474, 0.26601171
    %v971 = vmul.f32 %v475, 0.26601171
    %974 = vrot.lane.b32.xlu0 %v970, 123
    %v975 = vpop.permute.xlu0 %974
    %976 = vrot.lane.b32.xlu0 %v971, 123
    %v977 = vpop.permute.xlu0 %976
    %v980 = vadd.f32 %v968, %v975
    %v981 = vadd.f32 %v969, %v977
    %982 = vrot.lane.b32.xlu0 %v958, 122
    %v983 = vpop.permute.xlu0 %982
    %984 = vrot.lane.b32.xlu0 %v959, 122
    %v985 = vpop.permute.xlu0 %984
    %v988 = vadd.f32 %v980, %v983
    %v989 = vadd.f32 %v981, %v985
    %990 = vrot.lane.b32.xlu0 %v946, 121
    %v991 = vpop.permute.xlu0 %990
    %992 = vrot.lane.b32.xlu0 %v947, 121
    %v993 = vpop.permute.xlu0 %992
    %v996 = vadd.f32 %v988, %v991
    %v997 = vadd.f32 %v989, %v993
    %998 = vrot.lane.b32.xlu0 %v934, 120
    %v999 = vpop.permute.xlu0 %998
    %1000 = vrot.lane.b32.xlu0 %v935, 120
    %v1001 = vpop.permute.xlu0 %1000
    %v1004 = vadd.f32 %v996, %v999
    %v1005 = vadd.f32 %v997, %v1001
    %1006 = vrot.lane.b32.xlu0 %v922, 119
    %v1007 = vpop.permute.xlu0 %1006
    %1008 = vrot.lane.b32.xlu0 %v923, 119
    %v1009 = vpop.permute.xlu0 %1008
    %v1012 = vadd.f32 %v1004, %v1007
    %v1013 = vadd.f32 %v1005, %v1009
    %1016 = vrot.lane.b32.xlu0 %v920, 118
    %v1017 = vpop.permute.xlu0 %1016
    %1018 = vrot.lane.b32.xlu0 %v921, 118
    %v1019 = vpop.permute.xlu0 %1018
    %v1022 = vadd.f32 %v1012, %v1017
    %v1023 = vadd.f32 %v1013, %v1019
    %v1024 = vmul.f32 %v592, 0.0010283801
    %v1025 = vmul.f32 %v593, 0.0010283801
    %v1026 = vmul.f32 %v592, 0.007598758
    %v1027 = vmul.f32 %v593, 0.007598758
    %1030 = vrot.lane.b32.xlu0 %v1026, 127
    %v1031 = vpop.permute.xlu0 %1030
    %1032 = vrot.lane.b32.xlu0 %v1027, 127
    %v1033 = vpop.permute.xlu0 %1032
    %v1036 = vadd.f32 %v1024, %v1031
    %v1037 = vadd.f32 %v1025, %v1033
    %v1038 = vmul.f32 %v592, 0.036000773
    %v1039 = vmul.f32 %v593, 0.036000773
    %1042 = vrot.lane.b32.xlu0 %v1038, 126
    %v1043 = vpop.permute.xlu0 %1042
    %1044 = vrot.lane.b32.xlu0 %v1039, 126
    %v1045 = vpop.permute.xlu0 %1044
    %v1048 = vadd.f32 %v1036, %v1043
    %v1049 = vadd.f32 %v1037, %v1045
    %v1050 = vmul.f32 %v592, 0.10936069
    %v1051 = vmul.f32 %v593, 0.10936069
    %1054 = vrot.lane.b32.xlu0 %v1050, 125
    %v1055 = vpop.permute.xlu0 %1054
    %1056 = vrot.lane.b32.xlu0 %v1051, 125
    %v1057 = vpop.permute.xlu0 %1056
    %v1060 = vadd.f32 %v1048, %v1055
    %v1061 = vadd.f32 %v1049, %v1057
    %v1062 = vmul.f32 %v592, 0.21300554
    %v1063 = vmul.f32 %v593, 0.21300554
    %1066 = vrot.lane.b32.xlu0 %v1062, 124
    %v1067 = vpop.permute.xlu0 %1066
    %1068 = vrot.lane.b32.xlu0 %v1063, 124
    %v1069 = vpop.permute.xlu0 %1068
    %v1072 = vadd.f32 %v1060, %v1067
    %v1073 = vadd.f32 %v1061, %v1069
    %v1074 = vmul.f32 %v592, 0.26601171
    %v1075 = vmul.f32 %v593, 0.26601171
    %1078 = vrot.lane.b32.xlu0 %v1074, 123
    %v1079 = vpop.permute.xlu0 %1078
    %1080 = vrot.lane.b32.xlu0 %v1075, 123
    %v1081 = vpop.permute.xlu0 %1080
    %v1084 = vadd.f32 %v1072, %v1079
    %v1085 = vadd.f32 %v1073, %v1081
    %1086 = vrot.lane.b32.xlu0 %v1062, 122
    %v1087 = vpop.permute.xlu0 %1086
    %1088 = vrot.lane.b32.xlu0 %v1063, 122
    %v1089 = vpop.permute.xlu0 %1088
    %v1092 = vadd.f32 %v1084, %v1087
    %v1093 = vadd.f32 %v1085, %v1089
    %1094 = vrot.lane.b32.xlu0 %v1050, 121
    %v1095 = vpop.permute.xlu0 %1094
    %1096 = vrot.lane.b32.xlu0 %v1051, 121
    %v1097 = vpop.permute.xlu0 %1096
    %v1100 = vadd.f32 %v1092, %v1095
    %v1101 = vadd.f32 %v1093, %v1097
    %1102 = vrot.lane.b32.xlu0 %v1038, 120
    %v1103 = vpop.permute.xlu0 %1102
    %1104 = vrot.lane.b32.xlu0 %v1039, 120
    %v1105 = vpop.permute.xlu0 %1104
    %v1108 = vadd.f32 %v1100, %v1103
    %v1109 = vadd.f32 %v1101, %v1105
    %1110 = vrot.lane.b32.xlu0 %v1026, 119
    %v1111 = vpop.permute.xlu0 %1110
    %1112 = vrot.lane.b32.xlu0 %v1027, 119
    %v1113 = vpop.permute.xlu0 %1112
    %v1116 = vadd.f32 %v1108, %v1111
    %v1117 = vadd.f32 %v1109, %v1113
    %1120 = vrot.lane.b32.xlu0 %v1024, 118
    %v1121 = vpop.permute.xlu0 %1120
    %1122 = vrot.lane.b32.xlu0 %v1025, 118
    %v1123 = vpop.permute.xlu0 %1122
    %v1126 = vadd.f32 %v1116, %v1121
    %v1127 = vadd.f32 %v1117, %v1123
    %v1128 = vmul.f32 %v710, 0.0010283801
    %v1129 = vmul.f32 %v711, 0.0010283801
    %v1130 = vmul.f32 %v710, 0.007598758
    %v1131 = vmul.f32 %v711, 0.007598758
    %1134 = vrot.lane.b32.xlu0 %v1130, 127
    %v1135 = vpop.permute.xlu0 %1134
    %1136 = vrot.lane.b32.xlu0 %v1131, 127
    %v1137 = vpop.permute.xlu0 %1136
    %v1140 = vadd.f32 %v1128, %v1135
    %v1141 = vadd.f32 %v1129, %v1137
    %v1142 = vmul.f32 %v710, 0.036000773
    %v1143 = vmul.f32 %v711, 0.036000773
    %1146 = vrot.lane.b32.xlu0 %v1142, 126
    %v1147 = vpop.permute.xlu0 %1146
    %1148 = vrot.lane.b32.xlu0 %v1143, 126
    %v1149 = vpop.permute.xlu0 %1148
    %v1152 = vadd.f32 %v1140, %v1147
    %v1153 = vadd.f32 %v1141, %v1149
    %v1154 = vmul.f32 %v710, 0.10936069
    %v1155 = vmul.f32 %v711, 0.10936069
    %1158 = vrot.lane.b32.xlu0 %v1154, 125
    %v1159 = vpop.permute.xlu0 %1158
    %1160 = vrot.lane.b32.xlu0 %v1155, 125
    %v1161 = vpop.permute.xlu0 %1160
    %v1164 = vadd.f32 %v1152, %v1159
    %v1165 = vadd.f32 %v1153, %v1161
    %v1166 = vmul.f32 %v710, 0.21300554
    %v1167 = vmul.f32 %v711, 0.21300554
    %1170 = vrot.lane.b32.xlu0 %v1166, 124
    %v1171 = vpop.permute.xlu0 %1170
    %1172 = vrot.lane.b32.xlu0 %v1167, 124
    %v1173 = vpop.permute.xlu0 %1172
    %v1176 = vadd.f32 %v1164, %v1171
    %v1177 = vadd.f32 %v1165, %v1173
    %v1178 = vmul.f32 %v710, 0.26601171
    %v1179 = vmul.f32 %v711, 0.26601171
    %1182 = vrot.lane.b32.xlu0 %v1178, 123
    %v1183 = vpop.permute.xlu0 %1182
    %1184 = vrot.lane.b32.xlu0 %v1179, 123
    %v1185 = vpop.permute.xlu0 %1184
    %v1188 = vadd.f32 %v1176, %v1183
    %v1189 = vadd.f32 %v1177, %v1185
    %1190 = vrot.lane.b32.xlu0 %v1166, 122
    %v1191 = vpop.permute.xlu0 %1190
    %1192 = vrot.lane.b32.xlu0 %v1167, 122
    %v1193 = vpop.permute.xlu0 %1192
    %v1196 = vadd.f32 %v1188, %v1191
    %v1197 = vadd.f32 %v1189, %v1193
    %1198 = vrot.lane.b32.xlu0 %v1154, 121
    %v1199 = vpop.permute.xlu0 %1198
    %1200 = vrot.lane.b32.xlu0 %v1155, 121
    %v1201 = vpop.permute.xlu0 %1200
    %v1204 = vadd.f32 %v1196, %v1199
    %v1205 = vadd.f32 %v1197, %v1201
    %1206 = vrot.lane.b32.xlu0 %v1142, 120
    %v1207 = vpop.permute.xlu0 %1206
    %1208 = vrot.lane.b32.xlu0 %v1143, 120
    %v1209 = vpop.permute.xlu0 %1208
    %v1212 = vadd.f32 %v1204, %v1207
    %v1213 = vadd.f32 %v1205, %v1209
    %1214 = vrot.lane.b32.xlu0 %v1130, 119
    %v1215 = vpop.permute.xlu0 %1214
    %1216 = vrot.lane.b32.xlu0 %v1131, 119
    %v1217 = vpop.permute.xlu0 %1216
    %v1220 = vadd.f32 %v1212, %v1215
    %v1221 = vadd.f32 %v1213, %v1217
    %1224 = vrot.lane.b32.xlu0 %v1128, 118
    %v1225 = vpop.permute.xlu0 %1224
    %1226 = vrot.lane.b32.xlu0 %v1129, 118
    %v1227 = vpop.permute.xlu0 %1226
    %v1230 = vadd.f32 %v1220, %v1225
    %v1231 = vadd.f32 %v1221, %v1227
    %s1232 = sld [smem:[#allocation4]]
    %s1233 = sld [smem:[#allocation4 + $0x1]]
    %v1234 = vmul.f32 %v814, %v814
    %v1235 = vmul.f32 %v815, %v815
    %v1236 = vmul.f32 %v918, %v918
    %v1237 = vmul.f32 %v919, %v919
    %v1238 = vmul.f32 %v814, %v918
    %v1239 = vmul.f32 %v815, %v919
    %v1240 = vsub.f32 %v1022, %v1234
    %v1241 = vsub.f32 %v1023, %v1235
    %v1242 = vsub.f32 %v1126, %v1236
    %v1243 = vsub.f32 %v1127, %v1237
    %v1244 = vsub.f32 %v1230, %v1238
    %v1245 = vsub.f32 %v1231, %v1239
    %v1246 = vmul.f32 %v1244, 2.0
    %v1247 = vmul.f32 %v1245, 2.0
    %v1248 = vstv %s1233
    %v1249 = vadd.f32 %v1246, %v1248
    %v1250 = vadd.f32 %v1247, %v1248
    %v1251 = vadd.f32 %v1240, %v1242
    %v1252 = vadd.f32 %v1241, %v1243
    %v1253 = vadd.f32 %v1251, %v1248
    %v1254 = vadd.f32 %v1252, %v1248
    %v1255 = vmul.f32 %v1238, 2.0
    %v1256 = vmul.f32 %v1239, 2.0
    %v1257 = vstv %s1232
    %v1258 = vadd.f32 %v1255, %v1257
    %v1259 = vadd.f32 %v1256, %v1257
    %v1260 = vmul.f32 %v1258, %v1249
    %v1261 = vmul.f32 %v1259, %v1250
    %v1262 = vadd.f32 %v1234, %v1236
    %v1263 = vadd.f32 %v1235, %v1237
    %v1264 = vadd.f32 %v1262, %v1257
    %v1265 = vadd.f32 %v1263, %v1257
    %v1266 = vmul.f32 %v1264, %v1253
    %v1267 = vmul.f32 %v1265, %v1254
    %v1268 = vrcp.pop %v1266
    %v1269 = vrcp.pop %v1267
    %v1270 = vmul.f32 %v1260, %v1268
    %v1271 = vmul.f32 %v1261, %v1269
    %v1272 = vlaneseq
    %v1273 = vshrl.u32 %v1272, 7
    %v1274 = vadd.s32 %v1273, 8
    %s1275 = smul.u32 0, 16
    %v1276 = vstv %s1275
    %v1277 = vadd.s32 %v1273, %v1276
    %v1278 = vadd.s32 %v1274, %v1276
    %vm1279 = vcmp.lt.s32.totalorder %v1277, 6
    %vm1280 = vcmp.lt.s32.totalorder %v1278, 6
    %v1281 = vsel %vm1279, %v1270, 0.0
    %v1282 = vsel %vm1280, %v1271, 0.0
    %vm1283 = vcmask 48128
    %v1284 = vsel %vm1283, %v1281, 0.0
    %v1285 = vsel %vm1283, %v1282, 0.0
    %v1286 = vadd.f32 %v1284, %v1285
    %1287 = vadd.xlane.f32.xlu0 %v1286
    %v1288 = vpop.xlane.xlu0 %1287
    %v1289 = vrot.slane %v1288, 4
    %v1290 = vadd.f32 %v1288, %v1289
    %v1291 = vrot.slane %v1290, 2
    %v1292 = vadd.f32 %v1290, %v1291
    %v1293 = vrot.slane %v1292, 1
    %v1294 = vadd.f32 %v1292, %v1293
    %s1295 = vtos %v1294
    %v1296 = vstv %s1295
    %1297 = vst [vmem:[%s5] sm:$0xff] %v1296
    // Predicated region
    $region26: #{ssim_pallas.1} parent=1 // pred_check
      _
    $region27: #{ssim_pallas.1} parent=1 // pred_check_branch
      %1299 = sbr.rel (0) target = $region29
    $region28: #{ssim_pallas.1} parent=1 // pred_region
      _
    $region29: #{ssim_pallas.1} parent=1 // pred_fallthru
      _
    // Predicated region
    $region30: #{ssim_pallas.1} parent=1 // pred_check
      _
    $region31: #{ssim_pallas.1} parent=1 // pred_check_branch
      %1301 = sbr.rel (0) target = $region33
    $region32: #{ssim_pallas.1} parent=1 // pred_region
      _
    $region33: #{ssim_pallas.1} parent=1 // pred_fallthru
      _
    %1302 = vsyncpa [#allocation5], 1

</llo_original>
